<compile_context>
chip_gen: v6e
topology: v6e:2x2x1
jax: 0.10.0
libtpu: 0.0.40
codegen_flags: <defaults>
</compile_context>

<pallas_src>
import jax
import jax.numpy as jnp
from jax.experimental import pallas as pl
from jax.experimental.pallas import tpu as pltpu  # noqa: F401 (kept for easy CompilerParams tuning)

# ---- module hyper-parameters (from the PyTorch spec) ------------------------
DIM1 = 16                     # LSTM input_size (= feature width of cat(seq,stat,bse))
HIDDEN = 32                   # LSTM hidden size per direction
GATES = 4 * HIDDEN            # 128 gates per direction, PyTorch order [i|f|g|o]
H_FEAT = 2 * HIDDEN           # 64 (bidirectional)
DIM2 = 640                    # fc input width
SEQ_INNER = (DIM2 - H_FEAT) // H_FEAT     # 9 (required size of dim 1)
assert H_FEAT + SEQ_INNER * H_FEAT == DIM2


def _sigmoid(x):
    return 1.0 / (1.0 + jnp.exp(-x))


# -----------------------------------------------------------------------------
# Fused kernel: BiLSTM over axis 0 + attention + weighted pooling + fc head.
# x2d           : (T*N, 16)   row r = t*N + s   (row-major flatten of (T,N,16))
# wih_all,b_all : (16, 256) / (1, 256)   [forward gates | backward gates]
# whh_bd        : (64, 256)   block-diag: [:32, :128]=Whh_f, [32:, 128:]=Whh_r
# G / Gt        : (T, T*N) / (T*N, T)    group (time-step) indicator matrices
# colmask       : (T*N, 576)  colmask[r, s*64+d] = [s == r % N]
# w3d/b3d       : logit-difference weights (w3[:,1]-w3[:,0], b3[:,1]-b3[:,0])
# Outputs: y (T,1), a (T*N,1) normalized attention weights (reshaped in wrapper)
# -----------------------------------------------------------------------------
def _fused_kernel(x_ref, wih_ref, ball_ref, whhbd_ref,
                  ww_ref, bw_ref, vw_ref, bv_ref,
                  g_ref, gt_ref, colmask_ref,
                  w1_ref, b1_ref, w2_ref, b2_ref, w3d_ref, b3d_ref,
                  y_ref, a_ref):
    TN = x_ref.shape[0]
    T = g_ref.shape[0]
    N = TN // T

    # ---- hoisted input-to-hidden projection (both directions at once) ----
    gin_all = (jnp.dot(x_ref[...], wih_ref[...], preferred_element_type=jnp.float32)
               + ball_ref[...])                                        # (T*N, 256)
    whh_bd = whhbd_ref[...]                                            # (64, 256)

    # ---- merged forward/backward recurrence (static unroll; T is tiny) ----
    # TODO(synk): switch to lax.fori_loop + VMEM scratch if T grows beyond ~32.
    hcat = jnp.zeros((N, H_FEAT), jnp.float32)                         # [h_f | h_b]
    ccat = jnp.zeros((N, H_FEAT), jnp.float32)                         # [c_f | c_b]
    hf_out = [None] * T
    hb_out = [None] * T
    for j in range(T):
        tf, tb = j, T - 1 - j
        gin = jnp.concatenate(
            [gin_all[tf * N:(tf + 1) * N, 0:GATES],
             gin_all[tb * N:(tb + 1) * N, GATES:2 * GATES]], axis=1)   # (N, 256)
        g = jnp.dot(hcat, whh_bd, preferred_element_type=jnp.float32) + gin
        sg = _sigmoid(g)                      # one full-width EUP pass
        tg = jnp.tanh(g)                      # one full-width EUP pass
        icat = jnp.concatenate([sg[:, 0 * HIDDEN:1 * HIDDEN], sg[:, 4 * HIDDEN:5 * HIDDEN]], axis=1)
        fcat = jnp.concatenate([sg[:, 1 * HIDDEN:2 * HIDDEN], sg[:, 5 * HIDDEN:6 * HIDDEN]], axis=1)
        gcat = jnp.concatenate([tg[:, 2 * HIDDEN:3 * HIDDEN], tg[:, 6 * HIDDEN:7 * HIDDEN]], axis=1)
        ocat = jnp.concatenate([sg[:, 3 * HIDDEN:4 * HIDDEN], sg[:, 7 * HIDDEN:8 * HIDDEN]], axis=1)
        ccat = fcat * ccat + icat * gcat
        hcat = ocat * jnp.tanh(ccat)
        hf_out[tf] = hcat[:, :HIDDEN]          # forward hidden for time tf
        hb_out[tb] = hcat[:, HIDDEN:]          # backward hidden for time tb

    # H in (T*N, 64) layout (row r = t*N + s); never leaves VMEM.
    h_all = jnp.concatenate(
        [jnp.concatenate([hf_out[t], hb_out[t]], axis=1) for t in range(T)], axis=0)

    # ---- attention: two batched matmuls on the (T*N, 64) view ----
    pre = jnp.tanh(jnp.dot(h_all, ww_ref[...], preferred_element_type=jnp.float32)
                   + bw_ref[...])                                      # (T*N, 64)
    scores = (jnp.dot(pre, vw_ref[...], preferred_element_type=jnp.float32)
              + bv_ref[...])                                           # (T*N, 1)
    G = g_ref[...]                                                     # (T, T*N)
    Gt = gt_ref[...]                                                   # (T*N, T)
    # Global max keeps exp() in range; per-group softmax is shift invariant.
    e = jnp.exp(scores - jnp.max(scores, axis=0, keepdims=True))       # (T*N, 1)
    denom = jnp.dot(G, e, preferred_element_type=jnp.float32)          # (T, 1)
    inv = 1.0 / denom
    # M = A^T H  (attention-weighted pooling over the inner axis)
    Mv = jnp.dot(G, e * h_all, preferred_element_type=jnp.float32) * inv   # (T, 64)
    # Normalized attention weights, row r = t*N + s.
    a_ref[...] = e * jnp.dot(Gt, inv, preferred_element_type=jnp.float32)  # (T*N, 1)

    # ---- lane-dense (T, 576) H slab via one masked group matmul (no reshape) ----
    hrep = jnp.concatenate([h_all] * N, axis=1)                        # (T*N, 576)
    hflat = jnp.dot(G, hrep * colmask_ref[...],
                    preferred_element_type=jnp.float32)                # (T, 576)

    # ---- fc head: Linear(640,128)+ReLU -> Linear(128,64)+ReLU -> 2-class softmax[:,1]
    # TODO(synk): Dropout(0.2) layers are identity at inference; training-mode
    # dropout (RNG masking) is not implemented.
    xcat = jnp.concatenate([Mv, hflat], axis=1)                        # (T, 640)
    h1 = jnp.maximum(
        jnp.dot(xcat, w1_ref[...], preferred_element_type=jnp.float32) + b1_ref[...], 0.0)
    h2 = jnp.maximum(
        jnp.dot(h1, w2_ref[...], preferred_element_type=jnp.float32) + b2_ref[...], 0.0)
    # softmax([l0, l1])[1] == sigmoid(l1 - l0): fold slice + softmax into a sigmoid.
    y_ref[...] = _sigmoid(
        jnp.dot(h2, w3d_ref[...], preferred_element_type=jnp.float32) + b3d_ref[...])


# -----------------------------------------------------------------------------
# Wrapper: layout plumbing / constant packing stays in XLA (constant-folded).
# -----------------------------------------------------------------------------
def _pack_params(p, T):
    TN = T * SEQ_INNER
    wih_all = jnp.concatenate([p['wih_f'], p['wih_r']], axis=1)        # (16, 256)
    b_all = jnp.concatenate([p['b_f'], p['b_r']], axis=1)              # (1, 256)
    whh_bd = jnp.zeros((H_FEAT, 2 * GATES), jnp.float32)
    whh_bd = whh_bd.at[:HIDDEN, :GATES].set(p['whh_f'])
    whh_bd = whh_bd.at[HIDDEN:, GATES:].set(p['whh_r'])                # (64, 256)
    w3d = p['w3'][:, 1:2] - p['w3'][:, 0:1]                            # (64, 1)
    b3d = p['b3'][:, 1:2] - p['b3'][:, 0:1]                            # (1, 1)
    r = jnp.arange(TN)
    G = (r[None, :] // SEQ_INNER == jnp.arange(T)[:, None]).astype(jnp.float32)   # (T, TN)
    col = jnp.arange(SEQ_INNER * H_FEAT)
    colmask = ((col[None, :] // H_FEAT) == (r[:, None] % SEQ_INNER)).astype(jnp.float32)
    return dict(wih_all=wih_all, b_all=b_all, whh_bd=whh_bd, w3d=w3d, b3d=b3d,
                G=G, Gt=G.T, colmask=colmask)


def sub_model2_forward(seq, stat, bse, p):
    x1 = jnp.concatenate([seq.astype(jnp.float32),
                          stat.astype(jnp.float32),
                          bse.astype(jnp.float32)], axis=2)
    T, N, F = x1.shape
    assert F == DIM1 and N == SEQ_INNER, "shapes inconsistent with dim1=16 / dim2=640"
    x2d = x1.reshape(T * N, DIM1)
    q = _pack_params(p, T)

    y, a = pl.pallas_call(
        _fused_kernel,
        out_shape=(jax.ShapeDtypeStruct((T, 1), jnp.float32),
                   jax.ShapeDtypeStruct((T * N, 1), jnp.float32)),
    )(x2d, q['wih_all'], q['b_all'], q['whh_bd'],
      p['ww'], p['bw'], p['vw'], p['bv'],
      q['G'], q['Gt'], q['colmask'],
      p['w1'], p['b1'], p['w2'], p['b2'], q['w3d'], q['b3d'])

    A = a.reshape(T, SEQ_INNER)[:, None, :]          # == torch.transpose(A, 1, 2)
    return y, A


# -----------------------------------------------------------------------------
# Pure-JAX reference (same math / same base parameter layout)
# -----------------------------------------------------------------------------
def reference_forward(seq, stat, bse, p):
    x1 = jnp.concatenate([seq.astype(jnp.float32), stat.astype(jnp.float32),
                          bse.astype(jnp.float32)], axis=2)
    T, N, _ = x1.shape

    def run(wih, whh, b, reverse):
        h = jnp.zeros((N, HIDDEN), jnp.float32)
        c = jnp.zeros((N, HIDDEN), jnp.float32)
        outs = [None] * T
        order = range(T - 1, -1, -1) if reverse else range(T)
        for t in order:
            g = x1[t] @ wih + h @ whh + b
            i = _sigmoid(g[:, :HIDDEN])
            f = _sigmoid(g[:, HIDDEN:2 * HIDDEN])
            gg = jnp.tanh(g[:, 2 * HIDDEN:3 * HIDDEN])
            o = _sigmoid(g[:, 3 * HIDDEN:])
            c = f * c + i * gg
            h = o * jnp.tanh(c)
            outs[t] = h
        return jnp.stack(outs, axis=0)

    Hf = run(p['wih_f'], p['whh_f'], p['b_f'], False)
    Hb = run(p['wih_r'], p['whh_r'], p['b_r'], True)
    H = jnp.concatenate([Hf, Hb], axis=-1)                   # (T, N, 64)
    pre = jnp.tanh(H @ p['ww'] + p['bw'])
    sc = pre @ p['vw'] + p['bv']                             # (T, N, 1)
    A = jax.nn.softmax(sc, axis=1)
    At = jnp.transpose(A, (0, 2, 1))                         # (T, 1, N)
    M = jnp.matmul(At, H).reshape(T, -1)
    Hfl = H.reshape(T, -1)
    x = jnp.concatenate([M, Hfl], axis=1)
    h1 = jax.nn.relu(x @ p['w1'] + p['b1'])
    h2 = jax.nn.relu(h1 @ p['w2'] + p['b2'])
    logits = h2 @ p['w3'] + p['b3']
    probs = jax.nn.softmax(logits, axis=1)
    y = probs[:, 1].reshape(-1, 1)
    return y, At


def init_params(key):
    ks = jax.random.split(key, 16)

    def rnd(k, shape, scale=0.1):
        return jax.random.normal(k, shape, dtype=jnp.float32) * scale

    return {
        # LSTM (pre-transposed; bias = b_ih + b_hh; gate order [i|f|g|o])
        'wih_f': rnd(ks[0], (DIM1, 4 * HIDDEN)),
        'whh_f': rnd(ks[1], (HIDDEN, 4 * HIDDEN)),
        'b_f':   rnd(ks[2], (1, 4 * HIDDEN)),
        'wih_r': rnd(ks[3], (DIM1, 4 * HIDDEN)),
        'whh_r': rnd(ks[4], (HIDDEN, 4 * HIDDEN)),
        'b_r':   rnd(ks[5], (1, 4 * HIDDEN)),
        # Attention(64): W (64->64), V (64->1)
        'ww': rnd(ks[6], (H_FEAT, H_FEAT)),
        'bw': rnd(ks[7], (1, H_FEAT)),
        'vw': rnd(ks[8], (H_FEAT, 1)),
        'bv': rnd(ks[9], (1, 1)),
        # fc head
        'w1': rnd(ks[10], (DIM2, 128)),
        'b1': rnd(ks[11], (1, 128)),
        'w2': rnd(ks[12], (128, 64)),
        'b2': rnd(ks[13], (1, 64)),
        'w3': rnd(ks[14], (64, 2)),
        'b3': rnd(ks[15], (1, 2)),
    }


if __name__ == "__main__":
    T = 4                                  # leading dim (output "batch" of subModel2)
    key = jax.random.PRNGKey(0)
    k_seq, k_stat, k_bse, k_par = jax.random.split(key, 4)
    # cat(seq, stat, bse, dim=2) must give 16 features; dim 1 must be 9 (dim2=640).
    seq = jax.random.normal(k_seq, (T, SEQ_INNER, 8), dtype=jnp.float32)
    stat = jax.random.normal(k_stat, (T, SEQ_INNER, 4), dtype=jnp.float32)
    bse = jax.random.normal(k_bse, (T, SEQ_INNER, 4), dtype=jnp.float32)
    params = init_params(k_par)

    fwd = jax.jit(lambda a, b, c: sub_model2_forward(a, b, c, params))
    y, A = fwd(seq, stat, bse)
    y, A = jax.block_until_ready((y, A))

    y_ref, A_ref = reference_forward(seq, stat, bse, params)

    assert y.shape == (T, 1), y.shape
    assert A.shape == (T, 1, SEQ_INNER), A.shape
    assert jnp.allclose(y, y_ref, atol=5e-5, rtol=5e-5), "y mismatch vs reference"
    assert jnp.allclose(A, A_ref, atol=5e-5, rtol=5e-5), "A mismatch vs reference"
    print("KERNEL_OK")
</pallas_src>

<mosaic_0001>
module attributes {stable_mosaic.version = 11 : i64} {
  func.func @_fused_kernel(%arg0: memref<36x16xf32, #tpu.memory_space<vmem>>, %arg1: memref<16x256xf32, #tpu.memory_space<vmem>>, %arg2: memref<1x256xf32, #tpu.memory_space<vmem>>, %arg3: memref<64x256xf32, #tpu.memory_space<vmem>>, %arg4: memref<64x64xf32, #tpu.memory_space<vmem>>, %arg5: memref<1x64xf32, #tpu.memory_space<vmem>>, %arg6: memref<64x1xf32, #tpu.memory_space<vmem>>, %arg7: memref<1x1xf32, #tpu.memory_space<vmem>>, %arg8: memref<4x36xf32, #tpu.memory_space<vmem>>, %arg9: memref<36x4xf32, #tpu.memory_space<vmem>>, %arg10: memref<36x576xf32, #tpu.memory_space<vmem>>, %arg11: memref<640x128xf32, #tpu.memory_space<vmem>>, %arg12: memref<1x128xf32, #tpu.memory_space<vmem>>, %arg13: memref<128x64xf32, #tpu.memory_space<vmem>>, %arg14: memref<1x64xf32, #tpu.memory_space<vmem>>, %arg15: memref<64x1xf32, #tpu.memory_space<vmem>>, %arg16: memref<1x1xf32, #tpu.memory_space<vmem>>, %arg17: memref<4x1xf32, #tpu.memory_space<vmem>>, %arg18: memref<36x1xf32, #tpu.memory_space<vmem>>) attributes {dimension_semantics = [], scalar_prefetch = 0 : i64, scratch_operands = 0 : i64, tpu.core_type = #tpu.core_type<tc>} {
    %c0 = arith.constant 0 : index
    %c0_0 = arith.constant 0 : index
    %0 = vector.load %arg0[%c0, %c0_0] : memref<36x16xf32, #tpu.memory_space<vmem>>, vector<36x16xf32>
    %c0_1 = arith.constant 0 : index
    %c0_2 = arith.constant 0 : index
    %1 = vector.load %arg1[%c0_1, %c0_2] : memref<16x256xf32, #tpu.memory_space<vmem>>, vector<16x256xf32>
    %cst = arith.constant dense<0.000000e+00> : vector<36x256xf32>
    %2 = tpu.matmul %0, %1, %cst {dimension_numbers = #tpu.dot_dimension_numbers<[1], [0], [0], [1], [0, 0, 1, 1], [], []>} : vector<36x16xf32>, vector<16x256xf32>, vector<36x256xf32> -> vector<36x256xf32>
    %c0_3 = arith.constant 0 : index
    %c0_4 = arith.constant 0 : index
    %3 = vector.load %arg2[%c0_3, %c0_4] : memref<1x256xf32, #tpu.memory_space<vmem>>, vector<1x256xf32>
    %4 = vector.broadcast %3 : vector<1x256xf32> to vector<36x256xf32>
    %5 = arith.addf %2, %4 : vector<36x256xf32>
    %c0_5 = arith.constant 0 : index
    %c0_6 = arith.constant 0 : index
    %6 = vector.load %arg3[%c0_5, %c0_6] : memref<64x256xf32, #tpu.memory_space<vmem>>, vector<64x256xf32>
    %cst_7 = arith.constant 0.000000e+00 : f32
    %7 = vector.broadcast %cst_7 : f32 to vector<9x64xf32>
    %cst_8 = arith.constant 0.000000e+00 : f32
    %8 = vector.broadcast %cst_8 : f32 to vector<9x64xf32>
    %9 = vector.extract_strided_slice %5 {offsets = [0, 0], sizes = [9, 128], strides = [1, 1]} : vector<36x256xf32> to vector<9x128xf32>
    %10 = vector.extract_strided_slice %5 {offsets = [27, 128], sizes = [9, 128], strides = [1, 1]} : vector<36x256xf32> to vector<9x128xf32>
    %11 = tpu.concatenate %9, %10 in 1 : vector<9x128xf32>, vector<9x128xf32> -> vector<9x256xf32>
    %cst_9 = arith.constant dense<0.000000e+00> : vector<9x256xf32>
    %12 = tpu.matmul %7, %6, %cst_9 {dimension_numbers = #tpu.dot_dimension_numbers<[1], [0], [0], [1], [0, 0, 1, 1], [], []>} : vector<9x64xf32>, vector<64x256xf32>, vector<9x256xf32> -> vector<9x256xf32>
    %13 = arith.addf %12, %11 : vector<9x256xf32>
    %cst_10 = arith.constant 0.000000e+00 : f32
    %14 = vector.broadcast %cst_10 : f32 to vector<9x256xf32>
    %15 = arith.subf %14, %13 : vector<9x256xf32>
    %16 = math.exp %15 : vector<9x256xf32>
    %cst_11 = arith.constant 1.000000e+00 : f32
    %17 = vector.broadcast %cst_11 : f32 to vector<9x256xf32>
    %18 = arith.addf %17, %16 : vector<9x256xf32>
    %cst_12 = arith.constant 1.000000e+00 : f32
    %19 = vector.broadcast %cst_12 : f32 to vector<9x256xf32>
    %20 = arith.divf %19, %18 : vector<9x256xf32>
    %21 = math.tanh %13 : vector<9x256xf32>
    %22 = vector.extract_strided_slice %20 {offsets = [0, 0], sizes = [9, 32], strides = [1, 1]} : vector<9x256xf32> to vector<9x32xf32>
    %23 = vector.extract_strided_slice %20 {offsets = [0, 128], sizes = [9, 32], strides = [1, 1]} : vector<9x256xf32> to vector<9x32xf32>
    %24 = tpu.concatenate %22, %23 in 1 : vector<9x32xf32>, vector<9x32xf32> -> vector<9x64xf32>
    %25 = vector.extract_strided_slice %20 {offsets = [0, 32], sizes = [9, 32], strides = [1, 1]} : vector<9x256xf32> to vector<9x32xf32>
    %26 = vector.extract_strided_slice %20 {offsets = [0, 160], sizes = [9, 32], strides = [1, 1]} : vector<9x256xf32> to vector<9x32xf32>
    %27 = tpu.concatenate %25, %26 in 1 : vector<9x32xf32>, vector<9x32xf32> -> vector<9x64xf32>
    %28 = vector.extract_strided_slice %21 {offsets = [0, 64], sizes = [9, 32], strides = [1, 1]} : vector<9x256xf32> to vector<9x32xf32>
    %29 = vector.extract_strided_slice %21 {offsets = [0, 192], sizes = [9, 32], strides = [1, 1]} : vector<9x256xf32> to vector<9x32xf32>
    %30 = tpu.concatenate %28, %29 in 1 : vector<9x32xf32>, vector<9x32xf32> -> vector<9x64xf32>
    %31 = vector.extract_strided_slice %20 {offsets = [0, 96], sizes = [9, 32], strides = [1, 1]} : vector<9x256xf32> to vector<9x32xf32>
    %32 = vector.extract_strided_slice %20 {offsets = [0, 224], sizes = [9, 32], strides = [1, 1]} : vector<9x256xf32> to vector<9x32xf32>
    %33 = tpu.concatenate %31, %32 in 1 : vector<9x32xf32>, vector<9x32xf32> -> vector<9x64xf32>
    %34 = arith.mulf %27, %8 : vector<9x64xf32>
    %35 = arith.mulf %24, %30 : vector<9x64xf32>
    %36 = arith.addf %34, %35 : vector<9x64xf32>
    %37 = math.tanh %36 : vector<9x64xf32>
    %38 = arith.mulf %33, %37 : vector<9x64xf32>
    %39 = vector.extract_strided_slice %38 {offsets = [0, 0], sizes = [9, 32], strides = [1, 1]} : vector<9x64xf32> to vector<9x32xf32>
    %40 = vector.extract_strided_slice %38 {offsets = [0, 32], sizes = [9, 32], strides = [1, 1]} : vector<9x64xf32> to vector<9x32xf32>
    %41 = vector.extract_strided_slice %5 {offsets = [9, 0], sizes = [9, 128], strides = [1, 1]} : vector<36x256xf32> to vector<9x128xf32>
    %42 = vector.extract_strided_slice %5 {offsets = [18, 128], sizes = [9, 128], strides = [1, 1]} : vector<36x256xf32> to vector<9x128xf32>
    %43 = tpu.concatenate %41, %42 in 1 : vector<9x128xf32>, vector<9x128xf32> -> vector<9x256xf32>
    %cst_13 = arith.constant dense<0.000000e+00> : vector<9x256xf32>
    %44 = tpu.matmul %38, %6, %cst_13 {dimension_numbers = #tpu.dot_dimension_numbers<[1], [0], [0], [1], [0, 0, 1, 1], [], []>} : vector<9x64xf32>, vector<64x256xf32>, vector<9x256xf32> -> vector<9x256xf32>
    %45 = arith.addf %44, %43 : vector<9x256xf32>
    %cst_14 = arith.constant 0.000000e+00 : f32
    %46 = vector.broadcast %cst_14 : f32 to vector<9x256xf32>
    %47 = arith.subf %46, %45 : vector<9x256xf32>
    %48 = math.exp %47 : vector<9x256xf32>
    %cst_15 = arith.constant 1.000000e+00 : f32
    %49 = vector.broadcast %cst_15 : f32 to vector<9x256xf32>
    %50 = arith.addf %49, %48 : vector<9x256xf32>
    %cst_16 = arith.constant 1.000000e+00 : f32
    %51 = vector.broadcast %cst_16 : f32 to vector<9x256xf32>
    %52 = arith.divf %51, %50 : vector<9x256xf32>
    %53 = math.tanh %45 : vector<9x256xf32>
    %54 = vector.extract_strided_slice %52 {offsets = [0, 0], sizes = [9, 32], strides = [1, 1]} : vector<9x256xf32> to vector<9x32xf32>
    %55 = vector.extract_strided_slice %52 {offsets = [0, 128], sizes = [9, 32], strides = [1, 1]} : vector<9x256xf32> to vector<9x32xf32>
    %56 = tpu.concatenate %54, %55 in 1 : vector<9x32xf32>, vector<9x32xf32> -> vector<9x64xf32>
    %57 = vector.extract_strided_slice %52 {offsets = [0, 32], sizes = [9, 32], strides = [1, 1]} : vector<9x256xf32> to vector<9x32xf32>
    %58 = vector.extract_strided_slice %52 {offsets = [0, 160], sizes = [9, 32], strides = [1, 1]} : vector<9x256xf32> to vector<9x32xf32>
    %59 = tpu.concatenate %57, %58 in 1 : vector<9x32xf32>, vector<9x32xf32> -> vector<9x64xf32>
    %60 = vector.extract_strided_slice %53 {offsets = [0, 64], sizes = [9, 32], strides = [1, 1]} : vector<9x256xf32> to vector<9x32xf32>
    %61 = vector.extract_strided_slice %53 {offsets = [0, 192], sizes = [9, 32], strides = [1, 1]} : vector<9x256xf32> to vector<9x32xf32>
    %62 = tpu.concatenate %60, %61 in 1 : vector<9x32xf32>, vector<9x32xf32> -> vector<9x64xf32>
    %63 = vector.extract_strided_slice %52 {offsets = [0, 96], sizes = [9, 32], strides = [1, 1]} : vector<9x256xf32> to vector<9x32xf32>
    %64 = vector.extract_strided_slice %52 {offsets = [0, 224], sizes = [9, 32], strides = [1, 1]} : vector<9x256xf32> to vector<9x32xf32>
    %65 = tpu.concatenate %63, %64 in 1 : vector<9x32xf32>, vector<9x32xf32> -> vector<9x64xf32>
    %66 = arith.mulf %59, %36 : vector<9x64xf32>
    %67 = arith.mulf %56, %62 : vector<9x64xf32>
    %68 = arith.addf %66, %67 : vector<9x64xf32>
    %69 = math.tanh %68 : vector<9x64xf32>
    %70 = arith.mulf %65, %69 : vector<9x64xf32>
    %71 = vector.extract_strided_slice %70 {offsets = [0, 0], sizes = [9, 32], strides = [1, 1]} : vector<9x64xf32> to vector<9x32xf32>
    %72 = vector.extract_strided_slice %70 {offsets = [0, 32], sizes = [9, 32], strides = [1, 1]} : vector<9x64xf32> to vector<9x32xf32>
    %73 = vector.extract_strided_slice %5 {offsets = [18, 0], sizes = [9, 128], strides = [1, 1]} : vector<36x256xf32> to vector<9x128xf32>
    %74 = vector.extract_strided_slice %5 {offsets = [9, 128], sizes = [9, 128], strides = [1, 1]} : vector<36x256xf32> to vector<9x128xf32>
    %75 = tpu.concatenate %73, %74 in 1 : vector<9x128xf32>, vector<9x128xf32> -> vector<9x256xf32>
    %cst_17 = arith.constant dense<0.000000e+00> : vector<9x256xf32>
    %76 = tpu.matmul %70, %6, %cst_17 {dimension_numbers = #tpu.dot_dimension_numbers<[1], [0], [0], [1], [0, 0, 1, 1], [], []>} : vector<9x64xf32>, vector<64x256xf32>, vector<9x256xf32> -> vector<9x256xf32>
    %77 = arith.addf %76, %75 : vector<9x256xf32>
    %cst_18 = arith.constant 0.000000e+00 : f32
    %78 = vector.broadcast %cst_18 : f32 to vector<9x256xf32>
    %79 = arith.subf %78, %77 : vector<9x256xf32>
    %80 = math.exp %79 : vector<9x256xf32>
    %cst_19 = arith.constant 1.000000e+00 : f32
    %81 = vector.broadcast %cst_19 : f32 to vector<9x256xf32>
    %82 = arith.addf %81, %80 : vector<9x256xf32>
    %cst_20 = arith.constant 1.000000e+00 : f32
    %83 = vector.broadcast %cst_20 : f32 to vector<9x256xf32>
    %84 = arith.divf %83, %82 : vector<9x256xf32>
    %85 = math.tanh %77 : vector<9x256xf32>
    %86 = vector.extract_strided_slice %84 {offsets = [0, 0], sizes = [9, 32], strides = [1, 1]} : vector<9x256xf32> to vector<9x32xf32>
    %87 = vector.extract_strided_slice %84 {offsets = [0, 128], sizes = [9, 32], strides = [1, 1]} : vector<9x256xf32> to vector<9x32xf32>
    %88 = tpu.concatenate %86, %87 in 1 : vector<9x32xf32>, vector<9x32xf32> -> vector<9x64xf32>
    %89 = vector.extract_strided_slice %84 {offsets = [0, 32], sizes = [9, 32], strides = [1, 1]} : vector<9x256xf32> to vector<9x32xf32>
    %90 = vector.extract_strided_slice %84 {offsets = [0, 160], sizes = [9, 32], strides = [1, 1]} : vector<9x256xf32> to vector<9x32xf32>
    %91 = tpu.concatenate %89, %90 in 1 : vector<9x32xf32>, vector<9x32xf32> -> vector<9x64xf32>
    %92 = vector.extract_strided_slice %85 {offsets = [0, 64], sizes = [9, 32], strides = [1, 1]} : vector<9x256xf32> to vector<9x32xf32>
    %93 = vector.extract_strided_slice %85 {offsets = [0, 192], sizes = [9, 32], strides = [1, 1]} : vector<9x256xf32> to vector<9x32xf32>
    %94 = tpu.concatenate %92, %93 in 1 : vector<9x32xf32>, vector<9x32xf32> -> vector<9x64xf32>
    %95 = vector.extract_strided_slice %84 {offsets = [0, 96], sizes = [9, 32], strides = [1, 1]} : vector<9x256xf32> to vector<9x32xf32>
    %96 = vector.extract_strided_slice %84 {offsets = [0, 224], sizes = [9, 32], strides = [1, 1]} : vector<9x256xf32> to vector<9x32xf32>
    %97 = tpu.concatenate %95, %96 in 1 : vector<9x32xf32>, vector<9x32xf32> -> vector<9x64xf32>
    %98 = arith.mulf %91, %68 : vector<9x64xf32>
    %99 = arith.mulf %88, %94 : vector<9x64xf32>
    %100 = arith.addf %98, %99 : vector<9x64xf32>
    %101 = math.tanh %100 : vector<9x64xf32>
    %102 = arith.mulf %97, %101 : vector<9x64xf32>
    %103 = vector.extract_strided_slice %102 {offsets = [0, 0], sizes = [9, 32], strides = [1, 1]} : vector<9x64xf32> to vector<9x32xf32>
    %104 = vector.extract_strided_slice %102 {offsets = [0, 32], sizes = [9, 32], strides = [1, 1]} : vector<9x64xf32> to vector<9x32xf32>
    %105 = vector.extract_strided_slice %5 {offsets = [27, 0], sizes = [9, 128], strides = [1, 1]} : vector<36x256xf32> to vector<9x128xf32>
    %106 = vector.extract_strided_slice %5 {offsets = [0, 128], sizes = [9, 128], strides = [1, 1]} : vector<36x256xf32> to vector<9x128xf32>
    %107 = tpu.concatenate %105, %106 in 1 : vector<9x128xf32>, vector<9x128xf32> -> vector<9x256xf32>
    %cst_21 = arith.constant dense<0.000000e+00> : vector<9x256xf32>
    %108 = tpu.matmul %102, %6, %cst_21 {dimension_numbers = #tpu.dot_dimension_numbers<[1], [0], [0], [1], [0, 0, 1, 1], [], []>} : vector<9x64xf32>, vector<64x256xf32>, vector<9x256xf32> -> vector<9x256xf32>
    %109 = arith.addf %108, %107 : vector<9x256xf32>
    %cst_22 = arith.constant 0.000000e+00 : f32
    %110 = vector.broadcast %cst_22 : f32 to vector<9x256xf32>
    %111 = arith.subf %110, %109 : vector<9x256xf32>
    %112 = math.exp %111 : vector<9x256xf32>
    %cst_23 = arith.constant 1.000000e+00 : f32
    %113 = vector.broadcast %cst_23 : f32 to vector<9x256xf32>
    %114 = arith.addf %113, %112 : vector<9x256xf32>
    %cst_24 = arith.constant 1.000000e+00 : f32
    %115 = vector.broadcast %cst_24 : f32 to vector<9x256xf32>
    %116 = arith.divf %115, %114 : vector<9x256xf32>
    %117 = math.tanh %109 : vector<9x256xf32>
    %118 = vector.extract_strided_slice %116 {offsets = [0, 0], sizes = [9, 32], strides = [1, 1]} : vector<9x256xf32> to vector<9x32xf32>
    %119 = vector.extract_strided_slice %116 {offsets = [0, 128], sizes = [9, 32], strides = [1, 1]} : vector<9x256xf32> to vector<9x32xf32>
    %120 = tpu.concatenate %118, %119 in 1 : vector<9x32xf32>, vector<9x32xf32> -> vector<9x64xf32>
    %121 = vector.extract_strided_slice %116 {offsets = [0, 32], sizes = [9, 32], strides = [1, 1]} : vector<9x256xf32> to vector<9x32xf32>
    %122 = vector.extract_strided_slice %116 {offsets = [0, 160], sizes = [9, 32], strides = [1, 1]} : vector<9x256xf32> to vector<9x32xf32>
    %123 = tpu.concatenate %121, %122 in 1 : vector<9x32xf32>, vector<9x32xf32> -> vector<9x64xf32>
    %124 = vector.extract_strided_slice %117 {offsets = [0, 64], sizes = [9, 32], strides = [1, 1]} : vector<9x256xf32> to vector<9x32xf32>
    %125 = vector.extract_strided_slice %117 {offsets = [0, 192], sizes = [9, 32], strides = [1, 1]} : vector<9x256xf32> to vector<9x32xf32>
    %126 = tpu.concatenate %124, %125 in 1 : vector<9x32xf32>, vector<9x32xf32> -> vector<9x64xf32>
    %127 = vector.extract_strided_slice %116 {offsets = [0, 96], sizes = [9, 32], strides = [1, 1]} : vector<9x256xf32> to vector<9x32xf32>
    %128 = vector.extract_strided_slice %116 {offsets = [0, 224], sizes = [9, 32], strides = [1, 1]} : vector<9x256xf32> to vector<9x32xf32>
    %129 = tpu.concatenate %127, %128 in 1 : vector<9x32xf32>, vector<9x32xf32> -> vector<9x64xf32>
    %130 = arith.mulf %123, %100 : vector<9x64xf32>
    %131 = arith.mulf %120, %126 : vector<9x64xf32>
    %132 = arith.addf %130, %131 : vector<9x64xf32>
    %133 = math.tanh %132 : vector<9x64xf32>
    %134 = arith.mulf %129, %133 : vector<9x64xf32>
    %135 = vector.extract_strided_slice %134 {offsets = [0, 0], sizes = [9, 32], strides = [1, 1]} : vector<9x64xf32> to vector<9x32xf32>
    %136 = vector.extract_strided_slice %134 {offsets = [0, 32], sizes = [9, 32], strides = [1, 1]} : vector<9x64xf32> to vector<9x32xf32>
    %137 = tpu.concatenate %39, %136 in 1 : vector<9x32xf32>, vector<9x32xf32> -> vector<9x64xf32>
    %138 = tpu.concatenate %71, %104 in 1 : vector<9x32xf32>, vector<9x32xf32> -> vector<9x64xf32>
    %139 = tpu.concatenate %103, %72 in 1 : vector<9x32xf32>, vector<9x32xf32> -> vector<9x64xf32>
    %140 = tpu.concatenate %135, %40 in 1 : vector<9x32xf32>, vector<9x32xf32> -> vector<9x64xf32>
    %141 = tpu.concatenate %137, %138, %139, %140 in 0 : vector<9x64xf32>, vector<9x64xf32>, vector<9x64xf32>, vector<9x64xf32> -> vector<36x64xf32>
    %c0_25 = arith.constant 0 : index
    %c0_26 = arith.constant 0 : index
    %142 = vector.load %arg4[%c0_25, %c0_26] : memref<64x64xf32, #tpu.memory_space<vmem>>, vector<64x64xf32>
    %cst_27 = arith.constant dense<0.000000e+00> : vector<36x64xf32>
    %143 = tpu.matmul %141, %142, %cst_27 {dimension_numbers = #tpu.dot_dimension_numbers<[1], [0], [0], [1], [0, 0, 1, 1], [], []>} : vector<36x64xf32>, vector<64x64xf32>, vector<36x64xf32> -> vector<36x64xf32>
    %c0_28 = arith.constant 0 : index
    %c0_29 = arith.constant 0 : index
    %144 = vector.load %arg5[%c0_28, %c0_29] : memref<1x64xf32, #tpu.memory_space<vmem>>, vector<1x64xf32>
    %145 = vector.broadcast %144 : vector<1x64xf32> to vector<36x64xf32>
    %146 = arith.addf %143, %145 : vector<36x64xf32>
    %147 = math.tanh %146 : vector<36x64xf32>
    %c0_30 = arith.constant 0 : index
    %c0_31 = arith.constant 0 : index
    %148 = vector.load %arg6[%c0_30, %c0_31] : memref<64x1xf32, #tpu.memory_space<vmem>>, vector<64x1xf32>
    %cst_32 = arith.constant dense<0.000000e+00> : vector<36x1xf32>
    %149 = tpu.matmul %147, %148, %cst_32 {dimension_numbers = #tpu.dot_dimension_numbers<[1], [0], [0], [1], [0, 0, 1, 1], [], []>} : vector<36x64xf32>, vector<64x1xf32>, vector<36x1xf32> -> vector<36x1xf32>
    %c0_33 = arith.constant 0 : index
    %c0_34 = arith.constant 0 : index
    %150 = vector.load %arg7[%c0_33, %c0_34] : memref<1x1xf32, #tpu.memory_space<vmem>>, vector<1x1xf32>
    %151 = vector.broadcast %150 : vector<1x1xf32> to vector<36x1xf32>
    %152 = arith.addf %149, %151 : vector<36x1xf32>
    %c0_35 = arith.constant 0 : index
    %c0_36 = arith.constant 0 : index
    %153 = vector.load %arg8[%c0_35, %c0_36] : memref<4x36xf32, #tpu.memory_space<vmem>>, vector<4x36xf32>
    %c0_37 = arith.constant 0 : index
    %c0_38 = arith.constant 0 : index
    %154 = vector.load %arg9[%c0_37, %c0_38] : memref<36x4xf32, #tpu.memory_space<vmem>>, vector<36x4xf32>
    %cst_39 = arith.constant dense<0xFF800000> : vector<1xf32>
    %155 = vector.multi_reduction <maximumf>, %152, %cst_39 [0] : vector<36x1xf32> to vector<1xf32>
    %156 = vector.shape_cast %155 : vector<1xf32> to vector<1x1xf32>
    %157 = vector.broadcast %156 : vector<1x1xf32> to vector<36x1xf32>
    %158 = arith.subf %152, %157 : vector<36x1xf32>
    %159 = math.exp %158 : vector<36x1xf32>
    %cst_40 = arith.constant dense<0.000000e+00> : vector<4x1xf32>
    %160 = tpu.matmul %153, %159, %cst_40 {dimension_numbers = #tpu.dot_dimension_numbers<[1], [0], [0], [1], [0, 0, 1, 1], [], []>} : vector<4x36xf32>, vector<36x1xf32>, vector<4x1xf32> -> vector<4x1xf32>
    %cst_41 = arith.constant 1.000000e+00 : f32
    %161 = vector.broadcast %cst_41 : f32 to vector<4x1xf32>
    %162 = arith.divf %161, %160 : vector<4x1xf32>
    %163 = vector.broadcast %159 : vector<36x1xf32> to vector<36x64xf32>
    %164 = arith.mulf %163, %141 : vector<36x64xf32>
    %cst_42 = arith.constant dense<0.000000e+00> : vector<4x64xf32>
    %165 = tpu.matmul %153, %164, %cst_42 {dimension_numbers = #tpu.dot_dimension_numbers<[1], [0], [0], [1], [0, 0, 1, 1], [], []>} : vector<4x36xf32>, vector<36x64xf32>, vector<4x64xf32> -> vector<4x64xf32>
    %166 = vector.broadcast %162 : vector<4x1xf32> to vector<4x64xf32>
    %167 = arith.mulf %165, %166 : vector<4x64xf32>
    %cst_43 = arith.constant dense<0.000000e+00> : vector<36x1xf32>
    %168 = tpu.matmul %154, %162, %cst_43 {dimension_numbers = #tpu.dot_dimension_numbers<[1], [0], [0], [1], [0, 0, 1, 1], [], []>} : vector<36x4xf32>, vector<4x1xf32>, vector<36x1xf32> -> vector<36x1xf32>
    %169 = arith.mulf %159, %168 : vector<36x1xf32>
    %c0_44 = arith.constant 0 : index
    %c0_45 = arith.constant 0 : index
    %170 = vector.load %arg18[%c0_44, %c0_45] : memref<36x1xf32, #tpu.memory_space<vmem>>, vector<36x1xf32>
    tpu.vector_store %arg18[%c0_44, %c0_45], %169 {strides = array<i32>} : memref<36x1xf32, #tpu.memory_space<vmem>>, vector<36x1xf32>,
    %171 = tpu.concatenate %141, %141, %141, %141, %141, %141, %141, %141, %141 in 1 : vector<36x64xf32>, vector<36x64xf32>, vector<36x64xf32>, vector<36x64xf32>, vector<36x64xf32>, vector<36x64xf32>, vector<36x64xf32>, vector<36x64xf32>, vector<36x64xf32> -> vector<36x576xf32>
    %c0_46 = arith.constant 0 : index
    %c0_47 = arith.constant 0 : index
    %172 = vector.load %arg10[%c0_46, %c0_47] : memref<36x576xf32, #tpu.memory_space<vmem>>, vector<36x576xf32>
    %173 = arith.mulf %171, %172 : vector<36x576xf32>
    %cst_48 = arith.constant dense<0.000000e+00> : vector<4x576xf32>
    %174 = tpu.matmul %153, %173, %cst_48 {dimension_numbers = #tpu.dot_dimension_numbers<[1], [0], [0], [1], [0, 0, 1, 1], [], []>} : vector<4x36xf32>, vector<36x576xf32>, vector<4x576xf32> -> vector<4x576xf32>
    %175 = tpu.concatenate %167, %174 in 1 : vector<4x64xf32>, vector<4x576xf32> -> vector<4x640xf32>
    %c0_49 = arith.constant 0 : index
    %c0_50 = arith.constant 0 : index
    %176 = vector.load %arg11[%c0_49, %c0_50] : memref<640x128xf32, #tpu.memory_space<vmem>>, vector<640x128xf32>
    %cst_51 = arith.constant dense<0.000000e+00> : vector<4x128xf32>
    %177 = tpu.matmul %175, %176, %cst_51 {dimension_numbers = #tpu.dot_dimension_numbers<[1], [0], [0], [1], [0, 0, 1, 1], [], []>} : vector<4x640xf32>, vector<640x128xf32>, vector<4x128xf32> -> vector<4x128xf32>
    %c0_52 = arith.constant 0 : index
    %c0_53 = arith.constant 0 : index
    %178 = vector.load %arg12[%c0_52, %c0_53] : memref<1x128xf32, #tpu.memory_space<vmem>>, vector<1x128xf32>
    %179 = vector.broadcast %178 : vector<1x128xf32> to vector<4x128xf32>
    %180 = arith.addf %177, %179 : vector<4x128xf32>
    %cst_54 = arith.constant 0.000000e+00 : f32
    %181 = vector.broadcast %cst_54 : f32 to vector<4x128xf32>
    %182 = arith.maximumf %180, %181 : vector<4x128xf32>
    %c0_55 = arith.constant 0 : index
    %c0_56 = arith.constant 0 : index
    %183 = vector.load %arg13[%c0_55, %c0_56] : memref<128x64xf32, #tpu.memory_space<vmem>>, vector<128x64xf32>
    %cst_57 = arith.constant dense<0.000000e+00> : vector<4x64xf32>
    %184 = tpu.matmul %182, %183, %cst_57 {dimension_numbers = #tpu.dot_dimension_numbers<[1], [0], [0], [1], [0, 0, 1, 1], [], []>} : vector<4x128xf32>, vector<128x64xf32>, vector<4x64xf32> -> vector<4x64xf32>
    %c0_58 = arith.constant 0 : index
    %c0_59 = arith.constant 0 : index
    %185 = vector.load %arg14[%c0_58, %c0_59] : memref<1x64xf32, #tpu.memory_space<vmem>>, vector<1x64xf32>
    %186 = vector.broadcast %185 : vector<1x64xf32> to vector<4x64xf32>
    %187 = arith.addf %184, %186 : vector<4x64xf32>
    %cst_60 = arith.constant 0.000000e+00 : f32
    %188 = vector.broadcast %cst_60 : f32 to vector<4x64xf32>
    %189 = arith.maximumf %187, %188 : vector<4x64xf32>
    %c0_61 = arith.constant 0 : index
    %c0_62 = arith.constant 0 : index
    %190 = vector.load %arg15[%c0_61, %c0_62] : memref<64x1xf32, #tpu.memory_space<vmem>>, vector<64x1xf32>
    %cst_63 = arith.constant dense<0.000000e+00> : vector<4x1xf32>
    %191 = tpu.matmul %189, %190, %cst_63 {dimension_numbers = #tpu.dot_dimension_numbers<[1], [0], [0], [1], [0, 0, 1, 1], [], []>} : vector<4x64xf32>, vector<64x1xf32>, vector<4x1xf32> -> vector<4x1xf32>
    %c0_64 = arith.constant 0 : index
    %c0_65 = arith.constant 0 : index
    %192 = vector.load %arg16[%c0_64, %c0_65] : memref<1x1xf32, #tpu.memory_space<vmem>>, vector<1x1xf32>
    %193 = vector.broadcast %192 : vector<1x1xf32> to vector<4x1xf32>
    %194 = arith.addf %191, %193 : vector<4x1xf32>
    %cst_66 = arith.constant 0.000000e+00 : f32
    %195 = vector.broadcast %cst_66 : f32 to vector<4x1xf32>
    %196 = arith.subf %195, %194 : vector<4x1xf32>
    %197 = math.exp %196 : vector<4x1xf32>
    %cst_67 = arith.constant 1.000000e+00 : f32
    %198 = vector.broadcast %cst_67 : f32 to vector<4x1xf32>
    %199 = arith.addf %198, %197 : vector<4x1xf32>
    %cst_68 = arith.constant 1.000000e+00 : f32
    %200 = vector.broadcast %cst_68 : f32 to vector<4x1xf32>
    %201 = arith.divf %200, %199 : vector<4x1xf32>
    %c0_69 = arith.constant 0 : index
    %c0_70 = arith.constant 0 : index
    %202 = vector.load %arg17[%c0_69, %c0_70] : memref<4x1xf32, #tpu.memory_space<vmem>>, vector<4x1xf32>
    tpu.vector_store %arg17[%c0_69, %c0_70], %201 {strides = array<i32>} : memref<4x1xf32, #tpu.memory_space<vmem>>, vector<4x1xf32>,
    return
  }
}

</mosaic_0001>

<llo_original>
// kernel: _lambda_.1
$region0: #{_lambda_.1}
  #allocation0 [shape = 'u32[]', space=smem, size = 0x4, offset = 0x4, fixed_abs, tag = 'smem constant byte address 0x4 - core index']
  #allocation1 [shape = 'u32[144,128]{1,0:T(1,128)}', space=vmem, size = 0x12000, scoped, tag = 'internal scratch']
  #allocation2 [shape = 'f32[1,1]{1,0:T(1,128)S(1)}', space=vmem, size = 0x200, scoped, tag = 'scoped memory for _lambda_.1']
  #allocation3 [shape = 'f32[1,1]{1,0:T(1,128)S(1)}', space=vmem, size = 0x200, scoped, tag = 'scoped memory for _lambda_.1']
  %s0 = inlined_call_operand.vmem [shape: f32[36,16], index: 0, kind: input, shape index: {}]
  %s1 = inlined_call_operand.hbm [shape: f32[16,256], index: 1, kind: input, shape index: {}]
  %s2 = inlined_call_operand.vmem [shape: f32[1,256], index: 2, kind: input, shape index: {}]
  %s3 = inlined_call_operand.hbm [shape: f32[64,256], index: 3, kind: input, shape index: {}]
  %s4 = inlined_call_operand.hbm [shape: f32[64,64], index: 4, kind: input, shape index: {}]
  %s5 = inlined_call_operand.hbm [shape: f32[1,64], index: 5, kind: input, shape index: {}]
  %s6 = inlined_call_operand.hbm [shape: f32[64,1], index: 6, kind: input, shape index: {}]
  %s7 = inlined_call_operand.<no memory space> [shape: f32[1,1], index: 7, kind: input, shape index: {}]
  %s8 = inlined_call_operand.vmem [shape: f32[4,36], index: 8, kind: input, shape index: {}]
  %s9 = inlined_call_operand.vmem [shape: f32[36,4], index: 9, kind: input, shape index: {}]
  %s10 = inlined_call_operand.vmem [shape: f32[36,576], index: 10, kind: input, shape index: {}]
  %s11 = inlined_call_operand.vmem [shape: f32[640,128], index: 11, kind: input, shape index: {}]
  %s12 = inlined_call_operand.vmem [shape: f32[1,128], index: 12, kind: input, shape index: {}]
  %s13 = inlined_call_operand.hbm [shape: f32[128,64], index: 13, kind: input, shape index: {}]
  %s14 = inlined_call_operand.vmem [shape: f32[1,64], index: 14, kind: input, shape index: {}]
  %s15 = inlined_call_operand.hbm [shape: f32[64,1], index: 15, kind: input, shape index: {}]
  %s16 = inlined_call_operand.<no memory space> [shape: f32[1,1], index: 16, kind: input, shape index: {}]
  %s17 = inlined_call_operand.vmem [shape: f32[4,1], index: 17, kind: output, shape index: {0}]
  %s18 = inlined_call_operand.vmem [shape: f32[36,1], index: 18, kind: output, shape index: {1}]
  %19 = xla_tuple %s17, %s18
  %s20 = sld [smem:[#allocation0]]
  $region114: #{_lambda_.1} parent=0
    _
  %s22 = ssub.s32 1, %s20
  %s23 = scalar_select 0, %s22, %s20
  %v24 = vstv %s7
  %25 = vst [vmem:[#allocation2] sm:$0x1] %v24
  %v26 = vstv %s16
  %27 = vst [vmem:[#allocation3] sm:$0x1] %v26
  $region1: #{_lambda_.1} parent=0
    #allocation4 [shape = 'u8[16384]{0}', space=vmem, size = 0x4000, scoped, tag = 'input window, operand 1, single buffered']
    #allocation5 [shape = 's32[1]{0}', space=sflag, size = 0x4, scoped, tag = 'scoped memory for _lambda_.1']
    #allocation6 [shape = 'u8[65536]{0}', space=vmem, size = 0x10000, scoped, tag = 'input window, operand 3, single buffered']
    #allocation7 [shape = 's32[1]{0}', space=sflag, size = 0x4, scoped, tag = 'scoped memory for _lambda_.1']
    #allocation8 [shape = 'u8[32768]{0}', space=vmem, size = 0x8000, scoped, tag = 'input window, operand 4, single buffered']
    #allocation9 [shape = 'u8[512]{0}', space=vmem, size = 0x400, scoped, tag = 'input window, operand 5, single buffered']
    #allocation10 [shape = 's32[1]{0}', space=sflag, size = 0x4, scoped, tag = 'scoped memory for _lambda_.1']
    #allocation11 [shape = 'u8[32768]{0}', space=vmem, size = 0x8000, scoped, tag = 'input window, operand 6, single buffered']
    #allocation12 [shape = 'u8[65536]{0}', space=vmem, size = 0x10000, scoped, tag = 'input window, operand 13, single buffered']
    #allocation13 [shape = 's32[1]{0}', space=sflag, size = 0x4, scoped, tag = 'scoped memory for _lambda_.1']
    #allocation14 [shape = 'u8[32768]{0}', space=vmem, size = 0x8000, scoped, tag = 'input window, operand 15, single buffered']
    %28 = vsyncpa [#allocation5], 0
    %29 = vsyncpa [#allocation7], 0
    %30 = vsyncpa [#allocation10], 0
    %31 = vsyncpa [#allocation13], 0
    // Predicated region
    $region2: #{_lambda_.1} parent=1 // pred_check
      _
    $region3: #{_lambda_.1} parent=1 // pred_check_branch
      %33 = sbr.rel (0) target = $region5
    $region4: #{_lambda_.1} parent=1 // pred_region
      _
    $region5: #{_lambda_.1} parent=1 // pred_fallthru
      _
    // Predicated region
    $region6: #{_lambda_.1} parent=1 // pred_check
      _
    $region7: #{_lambda_.1} parent=1 // pred_check_branch
      %35 = sbr.rel (0) target = $region9
    $region8: #{_lambda_.1} parent=1 // pred_region
      %s37 = ssub.s32 512, 512
      %38 = vsyncadd [#allocation5], %s37
      %s39 = sshll.u32 [#allocation4], 4
      %s40 = int_to_ptr.vmem [resolvable:$true] %s39
      %45 = dma.hbm_to_vmem [thread:$0]  %s1, 512, %s40, [#allocation5], 256, 256, 16
    $region9: #{_lambda_.1} parent=1 // pred_fallthru
      _
    // Predicated region
    $region10: #{_lambda_.1} parent=1 // pred_check
      _
    $region11: #{_lambda_.1} parent=1 // pred_check_branch
      %47 = sbr.rel (0) target = $region13
    $region12: #{_lambda_.1} parent=1 // pred_region
      _
    $region13: #{_lambda_.1} parent=1 // pred_fallthru
      _
    // Predicated region
    $region14: #{_lambda_.1} parent=1 // pred_check
      _
    $region15: #{_lambda_.1} parent=1 // pred_check_branch
      %49 = sbr.rel (0) target = $region17
    $region16: #{_lambda_.1} parent=1 // pred_region
      %s51 = ssub.s32 2048, 2048
      %52 = vsyncadd [#allocation7], %s51
      %s53 = sshll.u32 [#allocation6], 4
      %s54 = int_to_ptr.vmem [resolvable:$true] %s53
      %59 = dma.hbm_to_vmem [thread:$0]  %s3, 2048, %s54, [#allocation7], 256, 256, 16
    $region17: #{_lambda_.1} parent=1 // pred_fallthru
      _
    // Predicated region
    $region18: #{_lambda_.1} parent=1 // pred_check
      _
    $region19: #{_lambda_.1} parent=1 // pred_check_branch
      %61 = sbr.rel (0) target = $region21
    $region20: #{_lambda_.1} parent=1 // pred_region
      %s63 = ssub.s32 1024, 1024
      %64 = vsyncadd [#allocation7], %s63
      %s65 = sshll.u32 [#allocation8], 4
      %s66 = int_to_ptr.vmem [resolvable:$true] %s65
      %71 = dma.hbm_to_vmem [thread:$0]  %s4, 1024, %s66, [#allocation7], 128, 128, 8
    $region21: #{_lambda_.1} parent=1 // pred_fallthru
      _
    // Predicated region
    $region22: #{_lambda_.1} parent=1 // pred_check
      _
    $region23: #{_lambda_.1} parent=1 // pred_check_branch
      %73 = sbr.rel (0) target = $region25
    $region24: #{_lambda_.1} parent=1 // pred_region
      %s75 = ssub.s32 16, 16
      %76 = vsyncadd [#allocation10], %s75
      %s78 = sshll.u32 [#allocation9], 4
      %s79 = int_to_ptr.vmem [resolvable:$true] %s78
      %81 = dma.hbm_to_vmem [thread:$0]  %s5, 16, %s79, [#allocation10]
    $region25: #{_lambda_.1} parent=1 // pred_fallthru
      _
    // Predicated region
    $region26: #{_lambda_.1} parent=1 // pred_check
      _
    $region27: #{_lambda_.1} parent=1 // pred_check_branch
      %83 = sbr.rel (0) target = $region29
    $region28: #{_lambda_.1} parent=1 // pred_region
      %s85 = ssub.s32 1024, 1024
      %86 = vsyncadd [#allocation10], %s85
      %s87 = sshll.u32 [#allocation11], 4
      %s88 = int_to_ptr.vmem [resolvable:$true] %s87
      %93 = dma.hbm_to_vmem [thread:$0]  %s6, 1024, %s88, [#allocation10], 128, 128, 8
    $region29: #{_lambda_.1} parent=1 // pred_fallthru
      _
    // Predicated region
    $region30: #{_lambda_.1} parent=1 // pred_check
      _
    $region31: #{_lambda_.1} parent=1 // pred_check_branch
      %95 = sbr.rel (0) target = $region33
    $region32: #{_lambda_.1} parent=1 // pred_region
      _
    $region33: #{_lambda_.1} parent=1 // pred_fallthru
      _
    // Predicated region
    $region34: #{_lambda_.1} parent=1 // pred_check
      _
    $region35: #{_lambda_.1} parent=1 // pred_check_branch
      %97 = sbr.rel (0) target = $region37
    $region36: #{_lambda_.1} parent=1 // pred_region
      _
    $region37: #{_lambda_.1} parent=1 // pred_fallthru
      _
    // Predicated region
    $region38: #{_lambda_.1} parent=1 // pred_check
      _
    $region39: #{_lambda_.1} parent=1 // pred_check_branch
      %99 = sbr.rel (0) target = $region41
    $region40: #{_lambda_.1} parent=1 // pred_region
      _
    $region41: #{_lambda_.1} parent=1 // pred_fallthru
      _
    // Predicated region
    $region42: #{_lambda_.1} parent=1 // pred_check
      _
    $region43: #{_lambda_.1} parent=1 // pred_check_branch
      %101 = sbr.rel (0) target = $region45
    $region44: #{_lambda_.1} parent=1 // pred_region
      _
    $region45: #{_lambda_.1} parent=1 // pred_fallthru
      _
    // Predicated region
    $region46: #{_lambda_.1} parent=1 // pred_check
      _
    $region47: #{_lambda_.1} parent=1 // pred_check_branch
      %103 = sbr.rel (0) target = $region49
    $region48: #{_lambda_.1} parent=1 // pred_region
      _
    $region49: #{_lambda_.1} parent=1 // pred_fallthru
      _
    // Predicated region
    $region50: #{_lambda_.1} parent=1 // pred_check
      _
    $region51: #{_lambda_.1} parent=1 // pred_check_branch
      %105 = sbr.rel (0) target = $region53
    $region52: #{_lambda_.1} parent=1 // pred_region
      _
    $region53: #{_lambda_.1} parent=1 // pred_fallthru
      _
    // Predicated region
    $region54: #{_lambda_.1} parent=1 // pred_check
      _
    $region55: #{_lambda_.1} parent=1 // pred_check_branch
      %107 = sbr.rel (0) target = $region57
    $region56: #{_lambda_.1} parent=1 // pred_region
      %s109 = ssub.s32 2048, 2048
      %110 = vsyncadd [#allocation13], %s109
      %s111 = sshll.u32 [#allocation12], 4
      %s112 = int_to_ptr.vmem [resolvable:$true] %s111
      %117 = dma.hbm_to_vmem [thread:$0]  %s13, 2048, %s112, [#allocation13], 128, 128, 8
    $region57: #{_lambda_.1} parent=1 // pred_fallthru
      _
    // Predicated region
    $region58: #{_lambda_.1} parent=1 // pred_check
      _
    $region59: #{_lambda_.1} parent=1 // pred_check_branch
      %119 = sbr.rel (0) target = $region61
    $region60: #{_lambda_.1} parent=1 // pred_region
      _
    $region61: #{_lambda_.1} parent=1 // pred_fallthru
      _
    // Predicated region
    $region62: #{_lambda_.1} parent=1 // pred_check
      _
    $region63: #{_lambda_.1} parent=1 // pred_check_branch
      %121 = sbr.rel (0) target = $region65
    $region64: #{_lambda_.1} parent=1 // pred_region
      %s123 = ssub.s32 1024, 1024
      %124 = vsyncadd [#allocation13], %s123
      %s125 = sshll.u32 [#allocation14], 4
      %s126 = int_to_ptr.vmem [resolvable:$true] %s125
      %131 = dma.hbm_to_vmem [thread:$0]  %s15, 1024, %s126, [#allocation13], 128, 128, 8
    $region65: #{_lambda_.1} parent=1 // pred_fallthru
      _
    // Predicated region
    $region66: #{_lambda_.1} parent=1 // pred_check
      _
    $region67: #{_lambda_.1} parent=1 // pred_check_branch
      %133 = sbr.rel (0) target = $region69
    $region68: #{_lambda_.1} parent=1 // pred_region
      _
    $region69: #{_lambda_.1} parent=1 // pred_fallthru
      _
    // Predicated region
    $region70: #{_lambda_.1} parent=1 // pred_check
      _
    $region71: #{_lambda_.1} parent=1 // pred_check_branch
      %135 = sbr.rel (0) target = $region73
    $region72: #{_lambda_.1} parent=1 // pred_region
      %136 = dma.done [#allocation5], 512
    $region73: #{_lambda_.1} parent=1 // pred_fallthru
      _
    // Predicated region
    $region74: #{_lambda_.1} parent=1 // pred_check
      _
    $region75: #{_lambda_.1} parent=1 // pred_check_branch
      %138 = sbr.rel (0) target = $region77
    $region76: #{_lambda_.1} parent=1 // pred_region
      %139 = dma.done [#allocation7], 2048
    $region77: #{_lambda_.1} parent=1 // pred_fallthru
      _
    // Predicated region
    $region78: #{_lambda_.1} parent=1 // pred_check
      _
    $region79: #{_lambda_.1} parent=1 // pred_check_branch
      %141 = sbr.rel (0) target = $region81
    $region80: #{_lambda_.1} parent=1 // pred_region
      %142 = dma.done [#allocation7], 1024
    $region81: #{_lambda_.1} parent=1 // pred_fallthru
      _
    // Predicated region
    $region82: #{_lambda_.1} parent=1 // pred_check
      _
    $region83: #{_lambda_.1} parent=1 // pred_check_branch
      %144 = sbr.rel (0) target = $region85
    $region84: #{_lambda_.1} parent=1 // pred_region
      %145 = dma.done [#allocation10], 16
    $region85: #{_lambda_.1} parent=1 // pred_fallthru
      _
    // Predicated region
    $region86: #{_lambda_.1} parent=1 // pred_check
      _
    $region87: #{_lambda_.1} parent=1 // pred_check_branch
      %147 = sbr.rel (0) target = $region89
    $region88: #{_lambda_.1} parent=1 // pred_region
      %148 = dma.done [#allocation10], 1024
    $region89: #{_lambda_.1} parent=1 // pred_fallthru
      _
    // Predicated region
    $region90: #{_lambda_.1} parent=1 // pred_check
      _
    $region91: #{_lambda_.1} parent=1 // pred_check_branch
      %150 = sbr.rel (0) target = $region93
    $region92: #{_lambda_.1} parent=1 // pred_region
      %151 = dma.done [#allocation13], 2048
    $region93: #{_lambda_.1} parent=1 // pred_fallthru
      _
    // Predicated region
    $region94: #{_lambda_.1} parent=1 // pred_check
      _
    $region95: #{_lambda_.1} parent=1 // pred_check_branch
      %153 = sbr.rel (0) target = $region97
    $region96: #{_lambda_.1} parent=1 // pred_region
      %154 = dma.done [#allocation13], 1024
    $region97: #{_lambda_.1} parent=1 // pred_fallthru
      _
    %v155 = vld [vmem:[%s0] sm:$0xff]
    %v156 = vld [vmem:[%s0 + $0x8] sm:$0xff]
    %v157 = vld [vmem:[%s0 + $0x10] sm:$0xff]
    %v158 = vld [vmem:[%s0 + $0x18] sm:$0xff]
    %v159 = vld [vmem:[%s0 + $0x20] sm:$0xf]
    %v160 = vld [vmem:[#allocation4] sm:$0xff]
    %v161 = vld [vmem:[#allocation4 + $0x8] sm:$0xff]
    %v162 = vld [vmem:[#allocation4 + $0x10] sm:$0xff]
    %v163 = vld [vmem:[#allocation4 + $0x18] sm:$0xff]
    %v164 = vld [vmem:[%s2] sm:$0x3]
    %v166 = vlaneseq
    %v167 = vshrl.u32 %v166, 7
    %v168 = vsub.s32 0, %v167
    %v169 = vrot.slane %v164, %v168
    %v170 = vlaneseq
    %v171 = vshrl.u32 %v170, 7
    %v172 = vsub.s32 1, %v171
    %v173 = vrot.slane %v164, %v172
    %vm176 = vcmask 130048
    %v178 = vsel %vm176, %v155, 0
    %v181 = vsel %vm176, %v156, 0
    %v184 = vsel %vm176, %v157, 0
    %v187 = vsel %vm176, %v158, 0
    %v190 = vsel %vm176, %v159, 0
    %192 = vmatprep.subr.mxu0 0.0
    %193 = vmatpush1.msra.mxu0 0.0
    %194 = vmatprep.subr.mxu0 0.0
    %195 = vmatpush1.msra.mxu0 0.0
    %196 = vmatprep.subr.mxu0 0.0
    %197 = vmatpush1.msra.mxu0 0.0
    %198 = vmatprep.subr.mxu0 0.0
    %199 = vmatpush1.msra.mxu0 0.0
    %200 = vmatprep.subr.mxu0 0.0
    %201 = vmatpush1.msra.mxu0 0.0
    %202 = vmatprep.subr.mxu0 0.0
    %203 = vmatpush1.msra.mxu0 0.0
    %204 = vmatprep.subr.mxu0 0.0
    %205 = vmatpush1.msra.mxu0 0.0
    %206 = vmatprep.subr.mxu0 0.0
    %207 = vmatpush1.msra.mxu0 0.0
    %208 = vmatprep.subr.mxu0 0.0
    %209 = vmatpush1.msra.mxu0 0.0
    %210 = vmatprep.subr.mxu0 0.0
    %211 = vmatpush1.msra.mxu0 0.0
    %212 = vmatprep.subr.mxu0 0.0
    %213 = vmatpush1.msra.mxu0 0.0
    %214 = vmatprep.subr.mxu0 0.0
    %215 = vmatpush1.msra.mxu0 0.0
    %216 = vmatprep.subr.mxu0 0.0
    %217 = vmatpush1.msra.mxu0 0.0
    %218 = vmatprep.subr.mxu0 0.0
    %219 = vmatpush1.msra.mxu0 0.0
    %220 = vmatprep.subr.mxu0 %v163
    %221 = vmatpush1.msra.mxu0 %v162
    %222 = vmatprep.subr.mxu0 %v161
    %223 = vmatpush1.msra.mxu0 %v160
    %224 = vmatprep.subr.mxu0 0.0
    %225 = vmatpush2.msra.mxu0 0.0
    %226 = vmatprep.subr.mxu0 0.0
    %227 = vmatpush2.msra.mxu0 0.0
    %228 = vmatprep.subr.mxu0 0.0
    %229 = vmatpush2.msra.mxu0 0.0
    %230 = vmatprep.subr.mxu0 0.0
    %231 = vmatpush2.msra.mxu0 0.0
    %232 = vmatprep.subr.mxu0 0.0
    %233 = vmatpush2.msra.mxu0 0.0
    %234 = vmatprep.subr.mxu0 0.0
    %235 = vmatpush2.msra.mxu0 0.0
    %236 = vmatprep.subr.mxu0 0.0
    %237 = vmatpush2.msra.mxu0 0.0
    %238 = vmatprep.subr.mxu0 0.0
    %239 = vmatpush2.msra.mxu0 0.0
    %240 = vmatprep.subr.mxu0 0.0
    %241 = vmatpush2.msra.mxu0 0.0
    %242 = vmatprep.subr.mxu0 0.0
    %243 = vmatpush2.msra.mxu0 0.0
    %244 = vmatprep.subr.mxu0 0.0
    %245 = vmatpush2.msra.mxu0 0.0
    %246 = vmatprep.subr.mxu0 0.0
    %247 = vmatpush2.msra.mxu0 0.0
    %248 = vmatprep.subr.mxu0 0.0
    %249 = vmatpush2.msra.mxu0 0.0
    %250 = vmatprep.subr.mxu0 0.0
    %251 = vmatpush2.msra.mxu0 0.0
    %252 = vmatprep.subr.mxu0 0.0
    %253 = vmatpush2.msra.mxu0 0.0
    %254 = vmatprep.subr.mxu0 0.0
    %255 = vmatpush2.msra.mxu0 0.0
    %256 = vmatprep.mubr.f32.mxu0 0.0
    %257 = vmatmul.mubr.f32.gmra.mxu0 %v178
    %v258 = vpop.f32.mrf.mxu0
    %v259 = vadd.f32 %v169, %v258
    %v260 = vpop.f32.mrf.mxu0
    %v261 = vadd.f32 %v173, %v260
    %262 = vmatprep.mubr.f32.mxu0 0.0
    %263 = vmatmul.mubr.f32.gmra.mxu0 %v181
    %v264 = vpop.f32.mrf.mxu0
    %v265 = vadd.f32 %v169, %v264
    %v266 = vpop.f32.mrf.mxu0
    %v267 = vadd.f32 %v173, %v266
    %268 = vmatprep.mubr.f32.mxu0 0.0
    %269 = vmatmul.mubr.f32.gmra.mxu0 %v184
    %v270 = vpop.f32.mrf.mxu0
    %v271 = vadd.f32 %v169, %v270
    %v272 = vpop.f32.mrf.mxu0
    %v273 = vadd.f32 %v173, %v272
    %274 = vmatprep.mubr.f32.mxu0 0.0
    %275 = vmatmul.mubr.f32.gmra.mxu0 %v187
    %v276 = vpop.f32.mrf.mxu0
    %v277 = vadd.f32 %v169, %v276
    %v278 = vpop.f32.mrf.mxu0
    %v279 = vadd.f32 %v173, %v278
    %280 = vmatprep.mubr.f32.mxu0 0.0
    %281 = vmatmul.mubr.f32.gmra.mxu0 %v190
    %v282 = vpop.f32.mrf.mxu0
    %v283 = vadd.f32 %v169, %v282
    %v284 = vpop.f32.mrf.mxu0
    %v285 = vadd.f32 %v173, %v284
    %286 = vdwg.mxu0
    %v287 = vld [vmem:[#allocation6] sm:$0xff]
    %v288 = vld [vmem:[#allocation6 + $0x8] sm:$0xff]
    %v289 = vld [vmem:[#allocation6 + $0x10] sm:$0xff]
    %v290 = vld [vmem:[#allocation6 + $0x18] sm:$0xff]
    %v291 = vld [vmem:[#allocation6 + $0x20] sm:$0xff]
    %v292 = vld [vmem:[#allocation6 + $0x28] sm:$0xff]
    %v293 = vld [vmem:[#allocation6 + $0x30] sm:$0xff]
    %v294 = vld [vmem:[#allocation6 + $0x38] sm:$0xff]
    %v295 = vld [vmem:[#allocation6 + $0x40] sm:$0xff]
    %v296 = vld [vmem:[#allocation6 + $0x48] sm:$0xff]
    %v297 = vld [vmem:[#allocation6 + $0x50] sm:$0xff]
    %v298 = vld [vmem:[#allocation6 + $0x58] sm:$0xff]
    %v299 = vld [vmem:[#allocation6 + $0x60] sm:$0xff]
    %v300 = vld [vmem:[#allocation6 + $0x68] sm:$0xff]
    %v301 = vld [vmem:[#allocation6 + $0x70] sm:$0xff]
    %v302 = vld [vmem:[#allocation6 + $0x78] sm:$0xff]
    %vm305 = vcmask 1044480
    %v306 = vrot.slane %v279, 3
    %v307 = vrot.slane %v285, 3
    %v308 = vsel %vm305, %v306, %v307
    %vm311 = vcmask 523264
    %v313 = vsel %vm311, 0.0, 0
    %315 = vmatprep.subr.mxu0 0.0
    %316 = vmatpush1.msra.mxu0 0.0
    %317 = vmatprep.subr.mxu0 0.0
    %318 = vmatpush1.msra.mxu0 0.0
    %319 = vmatprep.subr.mxu0 0.0
    %320 = vmatpush1.msra.mxu0 0.0
    %321 = vmatprep.subr.mxu0 0.0
    %322 = vmatpush1.msra.mxu0 0.0
    %323 = vmatprep.subr.mxu0 0.0
    %324 = vmatpush1.msra.mxu0 0.0
    %325 = vmatprep.subr.mxu0 0.0
    %326 = vmatpush1.msra.mxu0 0.0
    %327 = vmatprep.subr.mxu0 0.0
    %328 = vmatpush1.msra.mxu0 0.0
    %329 = vmatprep.subr.mxu0 0.0
    %330 = vmatpush1.msra.mxu0 0.0
    %331 = vmatprep.subr.mxu0 %v302
    %332 = vmatpush1.msra.mxu0 %v301
    %333 = vmatprep.subr.mxu0 %v300
    %334 = vmatpush1.msra.mxu0 %v299
    %335 = vmatprep.subr.mxu0 %v298
    %336 = vmatpush1.msra.mxu0 %v297
    %337 = vmatprep.subr.mxu0 %v296
    %338 = vmatpush1.msra.mxu0 %v295
    %339 = vmatprep.subr.mxu0 %v294
    %340 = vmatpush1.msra.mxu0 %v293
    %341 = vmatprep.subr.mxu0 %v292
    %342 = vmatpush1.msra.mxu0 %v291
    %343 = vmatprep.subr.mxu0 %v290
    %344 = vmatpush1.msra.mxu0 %v289
    %345 = vmatprep.subr.mxu0 %v288
    %346 = vmatpush1.msra.mxu0 %v287
    %347 = vmatprep.subr.mxu0 0.0
    %348 = vmatpush2.msra.mxu0 0.0
    %349 = vmatprep.subr.mxu0 0.0
    %350 = vmatpush2.msra.mxu0 0.0
    %351 = vmatprep.subr.mxu0 0.0
    %352 = vmatpush2.msra.mxu0 0.0
    %353 = vmatprep.subr.mxu0 0.0
    %354 = vmatpush2.msra.mxu0 0.0
    %355 = vmatprep.subr.mxu0 0.0
    %356 = vmatpush2.msra.mxu0 0.0
    %357 = vmatprep.subr.mxu0 0.0
    %358 = vmatpush2.msra.mxu0 0.0
    %359 = vmatprep.subr.mxu0 0.0
    %360 = vmatpush2.msra.mxu0 0.0
    %361 = vmatprep.subr.mxu0 0.0
    %362 = vmatpush2.msra.mxu0 0.0
    %363 = vmatprep.subr.mxu0 0.0
    %364 = vmatpush2.msra.mxu0 0.0
    %365 = vmatprep.subr.mxu0 0.0
    %366 = vmatpush2.msra.mxu0 0.0
    %367 = vmatprep.subr.mxu0 0.0
    %368 = vmatpush2.msra.mxu0 0.0
    %369 = vmatprep.subr.mxu0 0.0
    %370 = vmatpush2.msra.mxu0 0.0
    %371 = vmatprep.subr.mxu0 0.0
    %372 = vmatpush2.msra.mxu0 0.0
    %373 = vmatprep.subr.mxu0 0.0
    %374 = vmatpush2.msra.mxu0 0.0
    %375 = vmatprep.subr.mxu0 0.0
    %376 = vmatpush2.msra.mxu0 0.0
    %377 = vmatprep.subr.mxu0 0.0
    %378 = vmatpush2.msra.mxu0 0.0
    %379 = vmatprep.mubr.f32.mxu0 0.0
    %380 = vmatmul.mubr.f32.gmra.mxu0 %v313
    %v381 = vpop.f32.mrf.mxu0
    %v382 = vadd.f32 %v259, %v381
    %v383 = vpop.f32.mrf.mxu0
    %v384 = vadd.f32 %v308, %v383
    %385 = vmatprep.mubr.f32.mxu0 0.0
    %386 = vmatmul.mubr.f32.gmra.mxu0 %v313
    %v387 = vpop.f32.mrf.mxu0
    %v388 = vadd.f32 %v265, %v387
    %v389 = vpop.f32.mrf.mxu0
    %v390 = vadd.f32 %v307, %v389
    %391 = vdwg.mxu0
    %v392 = vsub.f32 0.0, %v382
    %v393 = vsub.f32 0.0, %v384
    %v394 = vsub.f32 0.0, %v388
    %v395 = vsub.f32 0.0, %v390
    %v396 = vmul.f32 %v392, 1.442695
    %v397 = vpow.pop %v396
    %v398 = vmul.f32 %v393, 1.442695
    %v399 = vpow.pop %v398
    %v400 = vmul.f32 %v394, 1.442695
    %v401 = vpow.pop %v400
    %v402 = vmul.f32 %v395, 1.442695
    %v403 = vpow.pop %v402
    %v404 = vadd.f32 %v397, 1.0
    %v405 = vadd.f32 %v399, 1.0
    %v406 = vadd.f32 %v401, 1.0
    %v407 = vadd.f32 %v403, 1.0
    %v408 = vrcp.pop %v404
    %v409 = vmul.f32 1.0, %v408
    %v410 = vrcp.pop %v405
    %v411 = vmul.f32 1.0, %v410
    %v412 = vrcp.pop %v406
    %v413 = vmul.f32 1.0, %v412
    %v414 = vrcp.pop %v407
    %v415 = vmul.f32 1.0, %v414
    %v416 = vtanh.pop %v382
    %v417 = vtanh.pop %v384
    %v418 = vtanh.pop %v388
    %v419 = vtanh.pop %v390
    %422 = vrot.lane.b32.xlu0 %v411, 32
    %v423 = vpop.permute.xlu0 %422
    %424 = vrot.lane.b32.xlu0 %v415, 32
    %v425 = vpop.permute.xlu0 %424
    %vm428 = vcmask 261120
    %v429 = vsel %vm428, %v409, %v423
    %v430 = vsel %vm428, %v413, %v425
    %433 = vrot.lane.b32.xlu0 %v409, 96
    %v434 = vpop.permute.xlu0 %433
    %435 = vrot.lane.b32.xlu0 %v413, 96
    %v436 = vpop.permute.xlu0 %435
    %v439 = vsel %vm428, %v434, %v411
    %v440 = vsel %vm428, %v436, %v415
    %443 = vrot.lane.b32.xlu0 %v416, 64
    %v444 = vpop.permute.xlu0 %443
    %445 = vrot.lane.b32.xlu0 %v418, 64
    %v446 = vpop.permute.xlu0 %445
    %451 = vrot.lane.b32.xlu0 %v417, 96
    %v452 = vpop.permute.xlu0 %451
    %453 = vrot.lane.b32.xlu0 %v419, 96
    %v454 = vpop.permute.xlu0 %453
    %v457 = vsel %vm428, %v444, %v452
    %v458 = vsel %vm428, %v446, %v454
    %459 = vrot.lane.b32.xlu0 %v409, 32
    %v460 = vpop.permute.xlu0 %459
    %461 = vrot.lane.b32.xlu0 %v413, 32
    %v462 = vpop.permute.xlu0 %461
    %465 = vrot.lane.b32.xlu0 %v411, 64
    %v466 = vpop.permute.xlu0 %465
    %467 = vrot.lane.b32.xlu0 %v415, 64
    %v468 = vpop.permute.xlu0 %467
    %v471 = vsel %vm428, %v460, %v466
    %v472 = vsel %vm428, %v462, %v468
    %v473 = vmul.f32 %v439, 0.0
    %v474 = vmul.f32 %v440, 0.0
    %v475 = vmul.f32 %v429, %v457
    %v476 = vmul.f32 %v430, %v458
    %v477 = vadd.f32 %v473, %v475
    %v478 = vadd.f32 %v474, %v476
    %v479 = vtanh.pop %v477
    %v480 = vtanh.pop %v478
    %v481 = vmul.f32 %v471, %v479
    %v482 = vmul.f32 %v472, %v480
    %vm484 = vcmask 1046528
    %v485 = vrot.slane %v273, 1
    %v486 = vrot.slane %v279, 1
    %v487 = vsel %vm484, %v485, %v486
    %v490 = vrot.slane %v265, 1
    %v491 = vrot.slane %v271, 1
    %v492 = vsel %vm484, %v490, %v491
    %v493 = vrot.slane %v487, 1
    %v494 = vrot.slane %v486, 1
    %v495 = vsel %vm484, %v493, %v494
    %v501 = vsel %vm311, %v481, 0
    %v504 = vsel %vm311, %v482, 0
    %506 = vmatprep.subr.mxu0 0.0
    %507 = vmatpush1.msra.mxu0 0.0
    %508 = vmatprep.subr.mxu0 0.0
    %509 = vmatpush1.msra.mxu0 0.0
    %510 = vmatprep.subr.mxu0 0.0
    %511 = vmatpush1.msra.mxu0 0.0
    %512 = vmatprep.subr.mxu0 0.0
    %513 = vmatpush1.msra.mxu0 0.0
    %514 = vmatprep.subr.mxu0 0.0
    %515 = vmatpush1.msra.mxu0 0.0
    %516 = vmatprep.subr.mxu0 0.0
    %517 = vmatpush1.msra.mxu0 0.0
    %518 = vmatprep.subr.mxu0 0.0
    %519 = vmatpush1.msra.mxu0 0.0
    %520 = vmatprep.subr.mxu0 0.0
    %521 = vmatpush1.msra.mxu0 0.0
    %522 = vmatprep.subr.mxu0 %v302
    %523 = vmatpush1.msra.mxu0 %v301
    %524 = vmatprep.subr.mxu0 %v300
    %525 = vmatpush1.msra.mxu0 %v299
    %526 = vmatprep.subr.mxu0 %v298
    %527 = vmatpush1.msra.mxu0 %v297
    %528 = vmatprep.subr.mxu0 %v296
    %529 = vmatpush1.msra.mxu0 %v295
    %530 = vmatprep.subr.mxu0 %v294
    %531 = vmatpush1.msra.mxu0 %v293
    %532 = vmatprep.subr.mxu0 %v292
    %533 = vmatpush1.msra.mxu0 %v291
    %534 = vmatprep.subr.mxu0 %v290
    %535 = vmatpush1.msra.mxu0 %v289
    %536 = vmatprep.subr.mxu0 %v288
    %537 = vmatpush1.msra.mxu0 %v287
    %538 = vmatprep.subr.mxu0 0.0
    %539 = vmatpush2.msra.mxu0 0.0
    %540 = vmatprep.subr.mxu0 0.0
    %541 = vmatpush2.msra.mxu0 0.0
    %542 = vmatprep.subr.mxu0 0.0
    %543 = vmatpush2.msra.mxu0 0.0
    %544 = vmatprep.subr.mxu0 0.0
    %545 = vmatpush2.msra.mxu0 0.0
    %546 = vmatprep.subr.mxu0 0.0
    %547 = vmatpush2.msra.mxu0 0.0
    %548 = vmatprep.subr.mxu0 0.0
    %549 = vmatpush2.msra.mxu0 0.0
    %550 = vmatprep.subr.mxu0 0.0
    %551 = vmatpush2.msra.mxu0 0.0
    %552 = vmatprep.subr.mxu0 0.0
    %553 = vmatpush2.msra.mxu0 0.0
    %554 = vmatprep.subr.mxu0 0.0
    %555 = vmatpush2.msra.mxu0 0.0
    %556 = vmatprep.subr.mxu0 0.0
    %557 = vmatpush2.msra.mxu0 0.0
    %558 = vmatprep.subr.mxu0 0.0
    %559 = vmatpush2.msra.mxu0 0.0
    %560 = vmatprep.subr.mxu0 0.0
    %561 = vmatpush2.msra.mxu0 0.0
    %562 = vmatprep.subr.mxu0 0.0
    %563 = vmatpush2.msra.mxu0 0.0
    %564 = vmatprep.subr.mxu0 0.0
    %565 = vmatpush2.msra.mxu0 0.0
    %566 = vmatprep.subr.mxu0 0.0
    %567 = vmatpush2.msra.mxu0 0.0
    %568 = vmatprep.subr.mxu0 0.0
    %569 = vmatpush2.msra.mxu0 0.0
    %570 = vmatprep.mubr.f32.mxu0 0.0
    %571 = vmatmul.mubr.f32.gmra.mxu0 %v501
    %v572 = vpop.f32.mrf.mxu0
    %v573 = vadd.f32 %v492, %v572
    %v574 = vpop.f32.mrf.mxu0
    %v575 = vadd.f32 %v495, %v574
    %576 = vmatprep.mubr.f32.mxu0 0.0
    %577 = vmatmul.mubr.f32.gmra.mxu0 %v504
    %v578 = vpop.f32.mrf.mxu0
    %v579 = vadd.f32 %v491, %v578
    %v580 = vpop.f32.mrf.mxu0
    %v581 = vadd.f32 %v494, %v580
    %582 = vdwg.mxu0
    %v583 = vsub.f32 0.0, %v573
    %v584 = vsub.f32 0.0, %v575
    %v585 = vsub.f32 0.0, %v579
    %v586 = vsub.f32 0.0, %v581
    %v587 = vmul.f32 %v583, 1.442695
    %v588 = vpow.pop %v587
    %v589 = vmul.f32 %v584, 1.442695
    %v590 = vpow.pop %v589
    %v591 = vmul.f32 %v585, 1.442695
    %v592 = vpow.pop %v591
    %v593 = vmul.f32 %v586, 1.442695
    %v594 = vpow.pop %v593
    %v595 = vadd.f32 %v588, 1.0
    %v596 = vadd.f32 %v590, 1.0
    %v597 = vadd.f32 %v592, 1.0
    %v598 = vadd.f32 %v594, 1.0
    %v599 = vrcp.pop %v595
    %v600 = vmul.f32 1.0, %v599
    %v601 = vrcp.pop %v596
    %v602 = vmul.f32 1.0, %v601
    %v603 = vrcp.pop %v597
    %v604 = vmul.f32 1.0, %v603
    %v605 = vrcp.pop %v598
    %v606 = vmul.f32 1.0, %v605
    %v607 = vtanh.pop %v573
    %v608 = vtanh.pop %v575
    %v609 = vtanh.pop %v579
    %v610 = vtanh.pop %v581
    %613 = vrot.lane.b32.xlu0 %v602, 32
    %v614 = vpop.permute.xlu0 %613
    %615 = vrot.lane.b32.xlu0 %v606, 32
    %v616 = vpop.permute.xlu0 %615
    %v619 = vsel %vm428, %v600, %v614
    %v620 = vsel %vm428, %v604, %v616
    %623 = vrot.lane.b32.xlu0 %v600, 96
    %v624 = vpop.permute.xlu0 %623
    %625 = vrot.lane.b32.xlu0 %v604, 96
    %v626 = vpop.permute.xlu0 %625
    %v629 = vsel %vm428, %v624, %v602
    %v630 = vsel %vm428, %v626, %v606
    %633 = vrot.lane.b32.xlu0 %v607, 64
    %v634 = vpop.permute.xlu0 %633
    %635 = vrot.lane.b32.xlu0 %v609, 64
    %v636 = vpop.permute.xlu0 %635
    %641 = vrot.lane.b32.xlu0 %v608, 96
    %v642 = vpop.permute.xlu0 %641
    %643 = vrot.lane.b32.xlu0 %v610, 96
    %v644 = vpop.permute.xlu0 %643
    %v647 = vsel %vm428, %v634, %v642
    %v648 = vsel %vm428, %v636, %v644
    %649 = vrot.lane.b32.xlu0 %v600, 32
    %v650 = vpop.permute.xlu0 %649
    %651 = vrot.lane.b32.xlu0 %v604, 32
    %v652 = vpop.permute.xlu0 %651
    %655 = vrot.lane.b32.xlu0 %v602, 64
    %v656 = vpop.permute.xlu0 %655
    %657 = vrot.lane.b32.xlu0 %v606, 64
    %v658 = vpop.permute.xlu0 %657
    %v661 = vsel %vm428, %v650, %v656
    %v662 = vsel %vm428, %v652, %v658
    %v663 = vmul.f32 %v629, %v477
    %v664 = vmul.f32 %v630, %v478
    %v665 = vmul.f32 %v619, %v647
    %v666 = vmul.f32 %v620, %v648
    %v667 = vadd.f32 %v663, %v665
    %v668 = vadd.f32 %v664, %v666
    %v669 = vtanh.pop %v667
    %v670 = vtanh.pop %v668
    %v671 = vmul.f32 %v661, %v669
    %v672 = vmul.f32 %v662, %v670
    %vm674 = vcmask 1040384
    %v675 = vrot.slane %v267, 7
    %v676 = vrot.slane %v273, 7
    %v677 = vsel %vm674, %v675, %v676
    %vm679 = vcmask 1045504
    %v680 = vrot.slane %v271, 2
    %v681 = vrot.slane %v277, 2
    %v682 = vsel %vm679, %v680, %v681
    %v683 = vrot.slane %v675, 2
    %v684 = vrot.slane %v677, 2
    %v685 = vsel %vm679, %v683, %v684
    %v691 = vsel %vm311, %v671, 0
    %v694 = vsel %vm311, %v672, 0
    %696 = vmatprep.subr.mxu0 0.0
    %697 = vmatpush1.msra.mxu0 0.0
    %698 = vmatprep.subr.mxu0 0.0
    %699 = vmatpush1.msra.mxu0 0.0
    %700 = vmatprep.subr.mxu0 0.0
    %701 = vmatpush1.msra.mxu0 0.0
    %702 = vmatprep.subr.mxu0 0.0
    %703 = vmatpush1.msra.mxu0 0.0
    %704 = vmatprep.subr.mxu0 0.0
    %705 = vmatpush1.msra.mxu0 0.0
    %706 = vmatprep.subr.mxu0 0.0
    %707 = vmatpush1.msra.mxu0 0.0
    %708 = vmatprep.subr.mxu0 0.0
    %709 = vmatpush1.msra.mxu0 0.0
    %710 = vmatprep.subr.mxu0 0.0
    %711 = vmatpush1.msra.mxu0 0.0
    %712 = vmatprep.subr.mxu0 %v302
    %713 = vmatpush1.msra.mxu0 %v301
    %714 = vmatprep.subr.mxu0 %v300
    %715 = vmatpush1.msra.mxu0 %v299
    %716 = vmatprep.subr.mxu0 %v298
    %717 = vmatpush1.msra.mxu0 %v297
    %718 = vmatprep.subr.mxu0 %v296
    %719 = vmatpush1.msra.mxu0 %v295
    %720 = vmatprep.subr.mxu0 %v294
    %721 = vmatpush1.msra.mxu0 %v293
    %722 = vmatprep.subr.mxu0 %v292
    %723 = vmatpush1.msra.mxu0 %v291
    %724 = vmatprep.subr.mxu0 %v290
    %725 = vmatpush1.msra.mxu0 %v289
    %726 = vmatprep.subr.mxu0 %v288
    %727 = vmatpush1.msra.mxu0 %v287
    %728 = vmatprep.subr.mxu0 0.0
    %729 = vmatpush2.msra.mxu0 0.0
    %730 = vmatprep.subr.mxu0 0.0
    %731 = vmatpush2.msra.mxu0 0.0
    %732 = vmatprep.subr.mxu0 0.0
    %733 = vmatpush2.msra.mxu0 0.0
    %734 = vmatprep.subr.mxu0 0.0
    %735 = vmatpush2.msra.mxu0 0.0
    %736 = vmatprep.subr.mxu0 0.0
    %737 = vmatpush2.msra.mxu0 0.0
    %738 = vmatprep.subr.mxu0 0.0
    %739 = vmatpush2.msra.mxu0 0.0
    %740 = vmatprep.subr.mxu0 0.0
    %741 = vmatpush2.msra.mxu0 0.0
    %742 = vmatprep.subr.mxu0 0.0
    %743 = vmatpush2.msra.mxu0 0.0
    %744 = vmatprep.subr.mxu0 0.0
    %745 = vmatpush2.msra.mxu0 0.0
    %746 = vmatprep.subr.mxu0 0.0
    %747 = vmatpush2.msra.mxu0 0.0
    %748 = vmatprep.subr.mxu0 0.0
    %749 = vmatpush2.msra.mxu0 0.0
    %750 = vmatprep.subr.mxu0 0.0
    %751 = vmatpush2.msra.mxu0 0.0
    %752 = vmatprep.subr.mxu0 0.0
    %753 = vmatpush2.msra.mxu0 0.0
    %754 = vmatprep.subr.mxu0 0.0
    %755 = vmatpush2.msra.mxu0 0.0
    %756 = vmatprep.subr.mxu0 0.0
    %757 = vmatpush2.msra.mxu0 0.0
    %758 = vmatprep.subr.mxu0 0.0
    %759 = vmatpush2.msra.mxu0 0.0
    %760 = vmatprep.mubr.f32.mxu0 0.0
    %761 = vmatmul.mubr.f32.gmra.mxu0 %v691
    %v762 = vpop.f32.mrf.mxu0
    %v763 = vadd.f32 %v682, %v762
    %v764 = vpop.f32.mrf.mxu0
    %v765 = vadd.f32 %v685, %v764
    %766 = vmatprep.mubr.f32.mxu0 0.0
    %767 = vmatmul.mubr.f32.gmra.mxu0 %v694
    %v768 = vpop.f32.mrf.mxu0
    %v769 = vadd.f32 %v681, %v768
    %v770 = vpop.f32.mrf.mxu0
    %v771 = vadd.f32 %v684, %v770
    %772 = vdwg.mxu0
    %v773 = vsub.f32 0.0, %v763
    %v774 = vsub.f32 0.0, %v765
    %v775 = vsub.f32 0.0, %v769
    %v776 = vsub.f32 0.0, %v771
    %v777 = vmul.f32 %v773, 1.442695
    %v778 = vpow.pop %v777
    %v779 = vmul.f32 %v774, 1.442695
    %v780 = vpow.pop %v779
    %v781 = vmul.f32 %v775, 1.442695
    %v782 = vpow.pop %v781
    %v783 = vmul.f32 %v776, 1.442695
    %v784 = vpow.pop %v783
    %v785 = vadd.f32 %v778, 1.0
    %v786 = vadd.f32 %v780, 1.0
    %v787 = vadd.f32 %v782, 1.0
    %v788 = vadd.f32 %v784, 1.0
    %v789 = vrcp.pop %v785
    %v790 = vmul.f32 1.0, %v789
    %v791 = vrcp.pop %v786
    %v792 = vmul.f32 1.0, %v791
    %v793 = vrcp.pop %v787
    %v794 = vmul.f32 1.0, %v793
    %v795 = vrcp.pop %v788
    %v796 = vmul.f32 1.0, %v795
    %v797 = vtanh.pop %v763
    %v798 = vtanh.pop %v765
    %v799 = vtanh.pop %v769
    %v800 = vtanh.pop %v771
    %803 = vrot.lane.b32.xlu0 %v792, 32
    %v804 = vpop.permute.xlu0 %803
    %805 = vrot.lane.b32.xlu0 %v796, 32
    %v806 = vpop.permute.xlu0 %805
    %v809 = vsel %vm428, %v790, %v804
    %v810 = vsel %vm428, %v794, %v806
    %813 = vrot.lane.b32.xlu0 %v790, 96
    %v814 = vpop.permute.xlu0 %813
    %815 = vrot.lane.b32.xlu0 %v794, 96
    %v816 = vpop.permute.xlu0 %815
    %v819 = vsel %vm428, %v814, %v792
    %v820 = vsel %vm428, %v816, %v796
    %823 = vrot.lane.b32.xlu0 %v797, 64
    %v824 = vpop.permute.xlu0 %823
    %825 = vrot.lane.b32.xlu0 %v799, 64
    %v826 = vpop.permute.xlu0 %825
    %831 = vrot.lane.b32.xlu0 %v798, 96
    %v832 = vpop.permute.xlu0 %831
    %833 = vrot.lane.b32.xlu0 %v800, 96
    %v834 = vpop.permute.xlu0 %833
    %v837 = vsel %vm428, %v824, %v832
    %v838 = vsel %vm428, %v826, %v834
    %839 = vrot.lane.b32.xlu0 %v790, 32
    %v840 = vpop.permute.xlu0 %839
    %841 = vrot.lane.b32.xlu0 %v794, 32
    %v842 = vpop.permute.xlu0 %841
    %845 = vrot.lane.b32.xlu0 %v792, 64
    %v846 = vpop.permute.xlu0 %845
    %847 = vrot.lane.b32.xlu0 %v796, 64
    %v848 = vpop.permute.xlu0 %847
    %v851 = vsel %vm428, %v840, %v846
    %v852 = vsel %vm428, %v842, %v848
    %v853 = vmul.f32 %v819, %v667
    %v854 = vmul.f32 %v820, %v668
    %v855 = vmul.f32 %v809, %v837
    %v856 = vmul.f32 %v810, %v838
    %v857 = vadd.f32 %v853, %v855
    %v858 = vadd.f32 %v854, %v856
    %v859 = vtanh.pop %v857
    %v860 = vtanh.pop %v858
    %v861 = vmul.f32 %v851, %v859
    %v862 = vmul.f32 %v852, %v860
    %vm864 = vcmask 1042432
    %v865 = vrot.slane %v261, 5
    %v866 = vrot.slane %v267, 5
    %v867 = vsel %vm864, %v865, %v866
    %v869 = vrot.slane %v277, 3
    %v870 = vrot.slane %v283, 3
    %v871 = vsel %vm305, %v869, %v870
    %v872 = vrot.slane %v865, 3
    %v873 = vrot.slane %v867, 3
    %v874 = vsel %vm305, %v872, %v873
    %v880 = vsel %vm311, %v861, 0
    %v883 = vsel %vm311, %v862, 0
    %885 = vmatprep.subr.mxu0 0.0
    %886 = vmatpush1.msra.mxu0 0.0
    %887 = vmatprep.subr.mxu0 0.0
    %888 = vmatpush1.msra.mxu0 0.0
    %889 = vmatprep.subr.mxu0 0.0
    %890 = vmatpush1.msra.mxu0 0.0
    %891 = vmatprep.subr.mxu0 0.0
    %892 = vmatpush1.msra.mxu0 0.0
    %893 = vmatprep.subr.mxu0 0.0
    %894 = vmatpush1.msra.mxu0 0.0
    %895 = vmatprep.subr.mxu0 0.0
    %896 = vmatpush1.msra.mxu0 0.0
    %897 = vmatprep.subr.mxu0 0.0
    %898 = vmatpush1.msra.mxu0 0.0
    %899 = vmatprep.subr.mxu0 0.0
    %900 = vmatpush1.msra.mxu0 0.0
    %901 = vmatprep.subr.mxu0 %v302
    %902 = vmatpush1.msra.mxu0 %v301
    %903 = vmatprep.subr.mxu0 %v300
    %904 = vmatpush1.msra.mxu0 %v299
    %905 = vmatprep.subr.mxu0 %v298
    %906 = vmatpush1.msra.mxu0 %v297
    %907 = vmatprep.subr.mxu0 %v296
    %908 = vmatpush1.msra.mxu0 %v295
    %909 = vmatprep.subr.mxu0 %v294
    %910 = vmatpush1.msra.mxu0 %v293
    %911 = vmatprep.subr.mxu0 %v292
    %912 = vmatpush1.msra.mxu0 %v291
    %913 = vmatprep.subr.mxu0 %v290
    %914 = vmatpush1.msra.mxu0 %v289
    %915 = vmatprep.subr.mxu0 %v288
    %916 = vmatpush1.msra.mxu0 %v287
    %917 = vmatprep.subr.mxu0 0.0
    %918 = vmatpush2.msra.mxu0 0.0
    %919 = vmatprep.subr.mxu0 0.0
    %920 = vmatpush2.msra.mxu0 0.0
    %921 = vmatprep.subr.mxu0 0.0
    %922 = vmatpush2.msra.mxu0 0.0
    %923 = vmatprep.subr.mxu0 0.0
    %924 = vmatpush2.msra.mxu0 0.0
    %925 = vmatprep.subr.mxu0 0.0
    %926 = vmatpush2.msra.mxu0 0.0
    %927 = vmatprep.subr.mxu0 0.0
    %928 = vmatpush2.msra.mxu0 0.0
    %929 = vmatprep.subr.mxu0 0.0
    %930 = vmatpush2.msra.mxu0 0.0
    %931 = vmatprep.subr.mxu0 0.0
    %932 = vmatpush2.msra.mxu0 0.0
    %933 = vmatprep.subr.mxu0 0.0
    %934 = vmatpush2.msra.mxu0 0.0
    %935 = vmatprep.subr.mxu0 0.0
    %936 = vmatpush2.msra.mxu0 0.0
    %937 = vmatprep.subr.mxu0 0.0
    %938 = vmatpush2.msra.mxu0 0.0
    %939 = vmatprep.subr.mxu0 0.0
    %940 = vmatpush2.msra.mxu0 0.0
    %941 = vmatprep.subr.mxu0 0.0
    %942 = vmatpush2.msra.mxu0 0.0
    %943 = vmatprep.subr.mxu0 0.0
    %944 = vmatpush2.msra.mxu0 0.0
    %945 = vmatprep.subr.mxu0 0.0
    %946 = vmatpush2.msra.mxu0 0.0
    %947 = vmatprep.subr.mxu0 0.0
    %948 = vmatpush2.msra.mxu0 0.0
    %949 = vmatprep.mubr.f32.mxu0 0.0
    %950 = vmatmul.mubr.f32.gmra.mxu0 %v880
    %v951 = vpop.f32.mrf.mxu0
    %v952 = vadd.f32 %v871, %v951
    %v953 = vpop.f32.mrf.mxu0
    %v954 = vadd.f32 %v874, %v953
    %955 = vmatprep.mubr.f32.mxu0 0.0
    %956 = vmatmul.mubr.f32.gmra.mxu0 %v883
    %v957 = vpop.f32.mrf.mxu0
    %v958 = vadd.f32 %v870, %v957
    %v959 = vpop.f32.mrf.mxu0
    %v960 = vadd.f32 %v873, %v959
    %961 = vdwg.mxu0
    %v962 = vsub.f32 0.0, %v952
    %v963 = vsub.f32 0.0, %v954
    %v964 = vsub.f32 0.0, %v958
    %v965 = vsub.f32 0.0, %v960
    %v966 = vmul.f32 %v962, 1.442695
    %v967 = vpow.pop %v966
    %v968 = vmul.f32 %v963, 1.442695
    %v969 = vpow.pop %v968
    %v970 = vmul.f32 %v964, 1.442695
    %v971 = vpow.pop %v970
    %v972 = vmul.f32 %v965, 1.442695
    %v973 = vpow.pop %v972
    %v974 = vadd.f32 %v967, 1.0
    %v975 = vadd.f32 %v969, 1.0
    %v976 = vadd.f32 %v971, 1.0
    %v977 = vadd.f32 %v973, 1.0
    %v978 = vrcp.pop %v974
    %v979 = vmul.f32 1.0, %v978
    %v980 = vrcp.pop %v975
    %v981 = vmul.f32 1.0, %v980
    %v982 = vrcp.pop %v976
    %v983 = vmul.f32 1.0, %v982
    %v984 = vrcp.pop %v977
    %v985 = vmul.f32 1.0, %v984
    %v986 = vtanh.pop %v952
    %v987 = vtanh.pop %v954
    %v988 = vtanh.pop %v958
    %v989 = vtanh.pop %v960
    %992 = vrot.lane.b32.xlu0 %v981, 32
    %v993 = vpop.permute.xlu0 %992
    %994 = vrot.lane.b32.xlu0 %v985, 32
    %v995 = vpop.permute.xlu0 %994
    %v998 = vsel %vm428, %v979, %v993
    %v999 = vsel %vm428, %v983, %v995
    %1002 = vrot.lane.b32.xlu0 %v979, 96
    %v1003 = vpop.permute.xlu0 %1002
    %1004 = vrot.lane.b32.xlu0 %v983, 96
    %v1005 = vpop.permute.xlu0 %1004
    %v1008 = vsel %vm428, %v1003, %v981
    %v1009 = vsel %vm428, %v1005, %v985
    %1012 = vrot.lane.b32.xlu0 %v986, 64
    %v1013 = vpop.permute.xlu0 %1012
    %1014 = vrot.lane.b32.xlu0 %v988, 64
    %v1015 = vpop.permute.xlu0 %1014
    %1020 = vrot.lane.b32.xlu0 %v987, 96
    %v1021 = vpop.permute.xlu0 %1020
    %1022 = vrot.lane.b32.xlu0 %v989, 96
    %v1023 = vpop.permute.xlu0 %1022
    %v1026 = vsel %vm428, %v1013, %v1021
    %v1027 = vsel %vm428, %v1015, %v1023
    %1028 = vrot.lane.b32.xlu0 %v979, 32
    %v1029 = vpop.permute.xlu0 %1028
    %1030 = vrot.lane.b32.xlu0 %v983, 32
    %v1031 = vpop.permute.xlu0 %1030
    %1034 = vrot.lane.b32.xlu0 %v981, 64
    %v1035 = vpop.permute.xlu0 %1034
    %1036 = vrot.lane.b32.xlu0 %v985, 64
    %v1037 = vpop.permute.xlu0 %1036
    %v1040 = vsel %vm428, %v1029, %v1035
    %v1041 = vsel %vm428, %v1031, %v1037
    %v1042 = vmul.f32 %v1008, %v857
    %v1043 = vmul.f32 %v1009, %v858
    %v1044 = vmul.f32 %v998, %v1026
    %v1045 = vmul.f32 %v999, %v1027
    %v1046 = vadd.f32 %v1042, %v1044
    %v1047 = vadd.f32 %v1043, %v1045
    %v1048 = vtanh.pop %v1046
    %v1049 = vtanh.pop %v1047
    %v1050 = vmul.f32 %v1040, %v1048
    %v1051 = vmul.f32 %v1041, %v1049
    %v1052 = vsel %vm428, %v481, %v1050
    %v1053 = vsel %vm428, %v482, %v1051
    %v1054 = vsel %vm428, %v671, %v861
    %v1055 = vsel %vm428, %v672, %v862
    %v1056 = vsel %vm428, %v861, %v671
    %v1057 = vsel %vm428, %v862, %v672
    %v1058 = vsel %vm428, %v1050, %v481
    %v1059 = vsel %vm428, %v1051, %v482
    %v1062 = vrot.slane %v1054, 7
    %v1063 = vrot.slane %v1055, 7
    %v1064 = vsel %vm674, %v1062, %v1063
    %vm1069 = vcmask 1041408
    %v1070 = vrot.slane %v1056, 6
    %v1071 = vrot.slane %v1057, 6
    %v1072 = vsel %vm1069, %v1070, %v1071
    %v1077 = vrot.slane %v1058, 5
    %v1078 = vrot.slane %v1059, 5
    %v1079 = vsel %vm864, %v1077, %v1078
    %v1082 = vsel %vm674, %v1053, %v1062
    %v1083 = vsel %vm1069, %v1064, %v1070
    %v1084 = vsel %vm864, %v1072, %v1077
    %v1085 = vld [vmem:[#allocation8] sm:$0xff]
    %v1086 = vld [vmem:[#allocation8 + $0x8] sm:$0xff]
    %v1087 = vld [vmem:[#allocation8 + $0x10] sm:$0xff]
    %v1088 = vld [vmem:[#allocation8 + $0x18] sm:$0xff]
    %v1089 = vld [vmem:[#allocation8 + $0x20] sm:$0xff]
    %v1090 = vld [vmem:[#allocation8 + $0x28] sm:$0xff]
    %v1091 = vld [vmem:[#allocation8 + $0x30] sm:$0xff]
    %v1092 = vld [vmem:[#allocation8 + $0x38] sm:$0xff]
    %v1093 = vld [vmem:[#allocation9] sm:$0x1]
    %v1095 = vlaneseq
    %v1096 = vshrl.u32 %v1095, 7
    %v1097 = vsub.s32 0, %v1096
    %v1098 = vrot.slane %v1093, %v1097
    %v1101 = vsel %vm311, %v1052, 0
    %v1104 = vsel %vm311, %v1082, 0
    %v1107 = vsel %vm311, %v1083, 0
    %v1110 = vsel %vm311, %v1084, 0
    %v1112 = vsel %vm311, %v1079, 0
    %1114 = vmatprep.subr.mxu0 0.0
    %1115 = vmatpush1.msra.mxu0 0.0
    %1116 = vmatprep.subr.mxu0 0.0
    %1117 = vmatpush1.msra.mxu0 0.0
    %1118 = vmatprep.subr.mxu0 0.0
    %1119 = vmatpush1.msra.mxu0 0.0
    %1120 = vmatprep.subr.mxu0 0.0
    %1121 = vmatpush1.msra.mxu0 0.0
    %1122 = vmatprep.subr.mxu0 0.0
    %1123 = vmatpush1.msra.mxu0 0.0
    %1124 = vmatprep.subr.mxu0 0.0
    %1125 = vmatpush1.msra.mxu0 0.0
    %1126 = vmatprep.subr.mxu0 0.0
    %1127 = vmatpush1.msra.mxu0 0.0
    %1128 = vmatprep.subr.mxu0 0.0
    %1129 = vmatpush1.msra.mxu0 0.0
    %1130 = vmatprep.subr.mxu0 0.0
    %1131 = vmatpush1.msra.mxu0 %v1092
    %1132 = vmatprep.subr.mxu0 0.0
    %1133 = vmatpush1.msra.mxu0 %v1091
    %1134 = vmatprep.subr.mxu0 0.0
    %1135 = vmatpush1.msra.mxu0 %v1090
    %1136 = vmatprep.subr.mxu0 0.0
    %1137 = vmatpush1.msra.mxu0 %v1089
    %1138 = vmatprep.subr.mxu0 0.0
    %1139 = vmatpush1.msra.mxu0 %v1088
    %1140 = vmatprep.subr.mxu0 0.0
    %1141 = vmatpush1.msra.mxu0 %v1087
    %1142 = vmatprep.subr.mxu0 0.0
    %1143 = vmatpush1.msra.mxu0 %v1086
    %1144 = vmatprep.subr.mxu0 0.0
    %1145 = vmatpush1.msra.mxu0 %v1085
    %1146 = vmatprep.subr.mxu0 0.0
    %1147 = vmatpush2.msra.mxu0 0.0
    %1148 = vmatprep.subr.mxu0 0.0
    %1149 = vmatpush2.msra.mxu0 0.0
    %1150 = vmatprep.subr.mxu0 0.0
    %1151 = vmatpush2.msra.mxu0 0.0
    %1152 = vmatprep.subr.mxu0 0.0
    %1153 = vmatpush2.msra.mxu0 0.0
    %1154 = vmatprep.subr.mxu0 0.0
    %1155 = vmatpush2.msra.mxu0 0.0
    %1156 = vmatprep.subr.mxu0 0.0
    %1157 = vmatpush2.msra.mxu0 0.0
    %1158 = vmatprep.subr.mxu0 0.0
    %1159 = vmatpush2.msra.mxu0 0.0
    %1160 = vmatprep.subr.mxu0 0.0
    %1161 = vmatpush2.msra.mxu0 0.0
    %1162 = vmatprep.subr.mxu0 0.0
    %1163 = vmatpush2.msra.mxu0 0.0
    %1164 = vmatprep.subr.mxu0 0.0
    %1165 = vmatpush2.msra.mxu0 0.0
    %1166 = vmatprep.subr.mxu0 0.0
    %1167 = vmatpush2.msra.mxu0 0.0
    %1168 = vmatprep.subr.mxu0 0.0
    %1169 = vmatpush2.msra.mxu0 0.0
    %1170 = vmatprep.subr.mxu0 0.0
    %1171 = vmatpush2.msra.mxu0 0.0
    %1172 = vmatprep.subr.mxu0 0.0
    %1173 = vmatpush2.msra.mxu0 0.0
    %1174 = vmatprep.subr.mxu0 0.0
    %1175 = vmatpush2.msra.mxu0 0.0
    %1176 = vmatprep.subr.mxu0 0.0
    %1177 = vmatpush2.msra.mxu0 0.0
    %1178 = vmatprep.mubr.f32.mxu0 0.0
    %1179 = vmatmul.mubr.f32.gmra.mxu0 %v1101
    %v1180 = vpop.f32.mrf.mxu0
    %v1181 = vadd.f32 %v1098, %v1180
    %v1182 = vpop.f32.mrf.mxu0
    %1183 = vmatprep.mubr.f32.mxu0 0.0
    %1184 = vmatmul.mubr.f32.gmra.mxu0 %v1104
    %v1185 = vpop.f32.mrf.mxu0
    %v1186 = vadd.f32 %v1098, %v1185
    %v1187 = vpop.f32.mrf.mxu0
    %1188 = vmatprep.mubr.f32.mxu0 0.0
    %1189 = vmatmul.mubr.f32.gmra.mxu0 %v1107
    %v1190 = vpop.f32.mrf.mxu0
    %v1191 = vadd.f32 %v1098, %v1190
    %v1192 = vpop.f32.mrf.mxu0
    %1193 = vmatprep.mubr.f32.mxu0 0.0
    %1194 = vmatmul.mubr.f32.gmra.mxu0 %v1110
    %v1195 = vpop.f32.mrf.mxu0
    %v1196 = vadd.f32 %v1098, %v1195
    %v1197 = vpop.f32.mrf.mxu0
    %1198 = vmatprep.mubr.f32.mxu0 0.0
    %1199 = vmatmul.mubr.f32.gmra.mxu0 %v1112
    %v1200 = vpop.f32.mrf.mxu0
    %v1201 = vadd.f32 %v1098, %v1200
    %v1202 = vpop.f32.mrf.mxu0
    %1203 = vdwg.mxu0
    %v1204 = vtanh.pop %v1181
    %v1205 = vtanh.pop %v1186
    %v1206 = vtanh.pop %v1191
    %v1207 = vtanh.pop %v1196
    %v1208 = vtanh.pop %v1201
    %v1209 = vld [vmem:[#allocation11] sm:$0xff]
    %v1210 = vld [vmem:[#allocation11 + $0x8] sm:$0xff]
    %v1211 = vld [vmem:[#allocation11 + $0x10] sm:$0xff]
    %v1212 = vld [vmem:[#allocation11 + $0x18] sm:$0xff]
    %v1213 = vld [vmem:[#allocation11 + $0x20] sm:$0xff]
    %v1214 = vld [vmem:[#allocation11 + $0x28] sm:$0xff]
    %v1215 = vld [vmem:[#allocation11 + $0x30] sm:$0xff]
    %v1216 = vld [vmem:[#allocation11 + $0x38] sm:$0xff]
    %v1217 = vld [vmem:[#allocation2] sm:$0x1]
    %v1219 = vlaneseq
    %v1220 = vshrl.u32 %v1219, 7
    %v1221 = vsub.s32 0, %v1220
    %v1222 = vrot.slane %v1217, %v1221
    %v1225 = vsel %vm311, %v1204, 0
    %v1228 = vsel %vm311, %v1205, 0
    %v1231 = vsel %vm311, %v1206, 0
    %v1234 = vsel %vm311, %v1207, 0
    %v1237 = vsel %vm311, %v1208, 0
    %1239 = vmatprep.subr.mxu0 0.0
    %1240 = vmatpush1.msra.mxu0 0.0
    %1241 = vmatprep.subr.mxu0 0.0
    %1242 = vmatpush1.msra.mxu0 0.0
    %1243 = vmatprep.subr.mxu0 0.0
    %1244 = vmatpush1.msra.mxu0 0.0
    %1245 = vmatprep.subr.mxu0 0.0
    %1246 = vmatpush1.msra.mxu0 0.0
    %1247 = vmatprep.subr.mxu0 0.0
    %1248 = vmatpush1.msra.mxu0 0.0
    %1249 = vmatprep.subr.mxu0 0.0
    %1250 = vmatpush1.msra.mxu0 0.0
    %1251 = vmatprep.subr.mxu0 0.0
    %1252 = vmatpush1.msra.mxu0 0.0
    %1253 = vmatprep.subr.mxu0 0.0
    %1254 = vmatpush1.msra.mxu0 0.0
    %1255 = vmatprep.subr.mxu0 0.0
    %1256 = vmatpush1.msra.mxu0 %v1216
    %1257 = vmatprep.subr.mxu0 0.0
    %1258 = vmatpush1.msra.mxu0 %v1215
    %1259 = vmatprep.subr.mxu0 0.0
    %1260 = vmatpush1.msra.mxu0 %v1214
    %1261 = vmatprep.subr.mxu0 0.0
    %1262 = vmatpush1.msra.mxu0 %v1213
    %1263 = vmatprep.subr.mxu0 0.0
    %1264 = vmatpush1.msra.mxu0 %v1212
    %1265 = vmatprep.subr.mxu0 0.0
    %1266 = vmatpush1.msra.mxu0 %v1211
    %1267 = vmatprep.subr.mxu0 0.0
    %1268 = vmatpush1.msra.mxu0 %v1210
    %1269 = vmatprep.subr.mxu0 0.0
    %1270 = vmatpush1.msra.mxu0 %v1209
    %1271 = vmatprep.subr.mxu0 0.0
    %1272 = vmatpush2.msra.mxu0 0.0
    %1273 = vmatprep.subr.mxu0 0.0
    %1274 = vmatpush2.msra.mxu0 0.0
    %1275 = vmatprep.subr.mxu0 0.0
    %1276 = vmatpush2.msra.mxu0 0.0
    %1277 = vmatprep.subr.mxu0 0.0
    %1278 = vmatpush2.msra.mxu0 0.0
    %1279 = vmatprep.subr.mxu0 0.0
    %1280 = vmatpush2.msra.mxu0 0.0
    %1281 = vmatprep.subr.mxu0 0.0
    %1282 = vmatpush2.msra.mxu0 0.0
    %1283 = vmatprep.subr.mxu0 0.0
    %1284 = vmatpush2.msra.mxu0 0.0
    %1285 = vmatprep.subr.mxu0 0.0
    %1286 = vmatpush2.msra.mxu0 0.0
    %1287 = vmatprep.subr.mxu0 0.0
    %1288 = vmatpush2.msra.mxu0 0.0
    %1289 = vmatprep.subr.mxu0 0.0
    %1290 = vmatpush2.msra.mxu0 0.0
    %1291 = vmatprep.subr.mxu0 0.0
    %1292 = vmatpush2.msra.mxu0 0.0
    %1293 = vmatprep.subr.mxu0 0.0
    %1294 = vmatpush2.msra.mxu0 0.0
    %1295 = vmatprep.subr.mxu0 0.0
    %1296 = vmatpush2.msra.mxu0 0.0
    %1297 = vmatprep.subr.mxu0 0.0
    %1298 = vmatpush2.msra.mxu0 0.0
    %1299 = vmatprep.subr.mxu0 0.0
    %1300 = vmatpush2.msra.mxu0 0.0
    %1301 = vmatprep.subr.mxu0 0.0
    %1302 = vmatpush2.msra.mxu0 0.0
    %1303 = vmatprep.mubr.f32.mxu0 0.0
    %1304 = vmatmul.mubr.f32.gmra.mxu0 %v1225
    %v1305 = vpop.f32.mrf.mxu0
    %v1306 = vadd.f32 %v1222, %v1305
    %v1307 = vpop.f32.mrf.mxu0
    %1308 = vmatprep.mubr.f32.mxu0 0.0
    %1309 = vmatmul.mubr.f32.gmra.mxu0 %v1228
    %v1310 = vpop.f32.mrf.mxu0
    %v1311 = vadd.f32 %v1222, %v1310
    %v1312 = vpop.f32.mrf.mxu0
    %1313 = vmatprep.mubr.f32.mxu0 0.0
    %1314 = vmatmul.mubr.f32.gmra.mxu0 %v1231
    %v1315 = vpop.f32.mrf.mxu0
    %v1316 = vadd.f32 %v1222, %v1315
    %v1317 = vpop.f32.mrf.mxu0
    %1318 = vmatprep.mubr.f32.mxu0 0.0
    %1319 = vmatmul.mubr.f32.gmra.mxu0 %v1234
    %v1320 = vpop.f32.mrf.mxu0
    %v1321 = vadd.f32 %v1222, %v1320
    %v1322 = vpop.f32.mrf.mxu0
    %1323 = vmatprep.mubr.f32.mxu0 0.0
    %1324 = vmatmul.mubr.f32.gmra.mxu0 %v1237
    %v1325 = vpop.f32.mrf.mxu0
    %v1326 = vadd.f32 %v1222, %v1325
    %v1327 = vpop.f32.mrf.mxu0
    %1328 = vdwg.mxu0
    %v1329 = vld [vmem:[%s8] sm:$0xf]
    %v1330 = vld [vmem:[%s9] sm:$0xff]
    %v1331 = vld [vmem:[%s9 + $0x8] sm:$0xff]
    %v1332 = vld [vmem:[%s9 + $0x10] sm:$0xff]
    %v1333 = vld [vmem:[%s9 + $0x18] sm:$0xff]
    %v1334 = vld [vmem:[%s9 + $0x20] sm:$0xf]
    %vm1335 = vcmask 7168
    %v1336 = vsel %vm1335, %v1306, -inf
    %v1337 = vsel %vm1335, %v1311, -inf
    %v1338 = vsel %vm1335, %v1316, -inf
    %v1339 = vsel %vm1335, %v1321, -inf
    %vm1340 = vcmask 3072
    %v1341 = vsel %vm1340, %v1326, -inf
    %v1342 = vmax.f32 %v1336, %v1341
    %v1343 = vmax.f32 %v1342, %v1337
    %v1344 = vmax.f32 %v1338, %v1339
    %v1345 = vmax.f32 %v1343, %v1344
    %v1346 = vrot.slane %v1345, 4
    %v1347 = vmax.f32 %v1345, %v1346
    %v1348 = vrot.slane %v1347, 2
    %v1349 = vmax.f32 %v1347, %v1348
    %v1350 = vrot.slane %v1349, 1
    %v1351 = vmax.f32 %v1349, %v1350
    %v1352 = vsub.f32 %v1306, %v1351
    %v1353 = vsub.f32 %v1311, %v1351
    %v1354 = vsub.f32 %v1316, %v1351
    %v1355 = vsub.f32 %v1321, %v1351
    %v1356 = vsub.f32 %v1326, %v1351
    %v1357 = vmul.f32 %v1352, 1.442695
    %v1358 = vpow.pop %v1357
    %v1359 = vmul.f32 %v1353, 1.442695
    %v1360 = vpow.pop %v1359
    %v1361 = vmul.f32 %v1354, 1.442695
    %v1362 = vpow.pop %v1361
    %v1363 = vmul.f32 %v1355, 1.442695
    %v1364 = vpow.pop %v1363
    %v1365 = vmul.f32 %v1356, 1.442695
    %v1366 = vpow.pop %v1365
    %vm1367 = vcmask 293888
    %v1369 = vsel %vm1367, %v1329, 0
    %vm1371 = vcmask 1043456
    %v1373 = vsel %vm1371, %v1366, 0
    %1375 = vmatprep.subr.mxu0 0.0
    %1376 = vmatpush1.msra.mxu0 0.0
    %1377 = vmatprep.subr.mxu0 0.0
    %1378 = vmatpush1.msra.mxu0 0.0
    %1379 = vmatprep.subr.mxu0 0.0
    %1380 = vmatpush1.msra.mxu0 0.0
    %1381 = vmatprep.subr.mxu0 0.0
    %1382 = vmatpush1.msra.mxu0 0.0
    %1383 = vmatprep.subr.mxu0 0.0
    %1384 = vmatpush1.msra.mxu0 0.0
    %1385 = vmatprep.subr.mxu0 0.0
    %1386 = vmatpush1.msra.mxu0 0.0
    %1387 = vmatprep.subr.mxu0 0.0
    %1388 = vmatpush1.msra.mxu0 0.0
    %1389 = vmatprep.subr.mxu0 0.0
    %1390 = vmatpush1.msra.mxu0 0.0
    %1391 = vmatprep.subr.mxu0 0.0
    %1392 = vmatpush1.msra.mxu0 0.0
    %1393 = vmatprep.subr.mxu0 0.0
    %1394 = vmatpush1.msra.mxu0 0.0
    %1395 = vmatprep.subr.mxu0 0.0
    %1396 = vmatpush1.msra.mxu0 0.0
    %1397 = vmatprep.subr.mxu0 0.0
    %1398 = vmatpush1.msra.mxu0 %v1373
    %1399 = vmatprep.subr.mxu0 0.0
    %1400 = vmatpush1.msra.mxu0 %v1364
    %1401 = vmatprep.subr.mxu0 0.0
    %1402 = vmatpush1.msra.mxu0 %v1362
    %1403 = vmatprep.subr.mxu0 0.0
    %1404 = vmatpush1.msra.mxu0 %v1360
    %1405 = vmatprep.subr.mxu0 0.0
    %1406 = vmatpush1.msra.mxu0 %v1358
    %1407 = vmatprep.subr.mxu0 0.0
    %1408 = vmatpush2.msra.mxu0 0.0
    %1409 = vmatprep.subr.mxu0 0.0
    %1410 = vmatpush2.msra.mxu0 0.0
    %1411 = vmatprep.subr.mxu0 0.0
    %1412 = vmatpush2.msra.mxu0 0.0
    %1413 = vmatprep.subr.mxu0 0.0
    %1414 = vmatpush2.msra.mxu0 0.0
    %1415 = vmatprep.subr.mxu0 0.0
    %1416 = vmatpush2.msra.mxu0 0.0
    %1417 = vmatprep.subr.mxu0 0.0
    %1418 = vmatpush2.msra.mxu0 0.0
    %1419 = vmatprep.subr.mxu0 0.0
    %1420 = vmatpush2.msra.mxu0 0.0
    %1421 = vmatprep.subr.mxu0 0.0
    %1422 = vmatpush2.msra.mxu0 0.0
    %1423 = vmatprep.subr.mxu0 0.0
    %1424 = vmatpush2.msra.mxu0 0.0
    %1425 = vmatprep.subr.mxu0 0.0
    %1426 = vmatpush2.msra.mxu0 0.0
    %1427 = vmatprep.subr.mxu0 0.0
    %1428 = vmatpush2.msra.mxu0 0.0
    %1429 = vmatprep.subr.mxu0 0.0
    %1430 = vmatpush2.msra.mxu0 0.0
    %1431 = vmatprep.subr.mxu0 0.0
    %1432 = vmatpush2.msra.mxu0 0.0
    %1433 = vmatprep.subr.mxu0 0.0
    %1434 = vmatpush2.msra.mxu0 0.0
    %1435 = vmatprep.subr.mxu0 0.0
    %1436 = vmatpush2.msra.mxu0 0.0
    %1437 = vmatprep.subr.mxu0 0.0
    %1438 = vmatpush2.msra.mxu0 0.0
    %1439 = vmatprep.mubr.f32.mxu0 0.0
    %1440 = vmatmul.mubr.f32.gmra.mxu0 %v1369
    %v1441 = vpop.f32.mrf.mxu0
    %v1442 = vadd.f32 0.0, %v1441
    %v1443 = vpop.f32.mrf.mxu0
    %1444 = vdwg.mxu0
    %v1445 = vrcp.pop %v1442
    %v1446 = vmul.f32 1.0, %v1445
    %1448 = vset.pattern.permute.xlu0 0
    %1449 = vperm.xlu0 %1448, %v1358
    %v1450 = vpop.permute.xlu0 %1449
    %1453 = vset.pattern.permute.xlu0 0
    %1454 = vperm.xlu0 %1453, %v1360
    %v1455 = vpop.permute.xlu0 %1454
    %1458 = vset.pattern.permute.xlu0 0
    %1459 = vperm.xlu0 %1458, %v1362
    %v1460 = vpop.permute.xlu0 %1459
    %1463 = vset.pattern.permute.xlu0 0
    %1464 = vperm.xlu0 %1463, %v1364
    %v1465 = vpop.permute.xlu0 %1464
    %1467 = vset.pattern.permute.xlu0 0
    %1468 = vperm.xlu0 %1467, %v1366
    %v1469 = vpop.permute.xlu0 %1468
    %v1471 = vmul.f32 %v1450, %v1052
    %v1472 = vmul.f32 %v1455, %v1082
    %v1473 = vmul.f32 %v1460, %v1083
    %v1474 = vmul.f32 %v1465, %v1084
    %v1475 = vmul.f32 %v1469, %v1079
    %v1477 = vsel %vm1371, %v1475, 0
    %1479 = vmatprep.subr.mxu0 0.0
    %1480 = vmatpush1.msra.mxu0 0.0
    %1481 = vmatprep.subr.mxu0 0.0
    %1482 = vmatpush1.msra.mxu0 0.0
    %1483 = vmatprep.subr.mxu0 0.0
    %1484 = vmatpush1.msra.mxu0 0.0
    %1485 = vmatprep.subr.mxu0 0.0
    %1486 = vmatpush1.msra.mxu0 0.0
    %1487 = vmatprep.subr.mxu0 0.0
    %1488 = vmatpush1.msra.mxu0 0.0
    %1489 = vmatprep.subr.mxu0 0.0
    %1490 = vmatpush1.msra.mxu0 0.0
    %1491 = vmatprep.subr.mxu0 0.0
    %1492 = vmatpush1.msra.mxu0 0.0
    %1493 = vmatprep.subr.mxu0 0.0
    %1494 = vmatpush1.msra.mxu0 0.0
    %1495 = vmatprep.subr.mxu0 0.0
    %1496 = vmatpush1.msra.mxu0 0.0
    %1497 = vmatprep.subr.mxu0 0.0
    %1498 = vmatpush1.msra.mxu0 0.0
    %1499 = vmatprep.subr.mxu0 0.0
    %1500 = vmatpush1.msra.mxu0 0.0
    %1501 = vmatprep.subr.mxu0 0.0
    %1502 = vmatpush1.msra.mxu0 %v1477
    %1503 = vmatprep.subr.mxu0 0.0
    %1504 = vmatpush1.msra.mxu0 %v1474
    %1505 = vmatprep.subr.mxu0 0.0
    %1506 = vmatpush1.msra.mxu0 %v1473
    %1507 = vmatprep.subr.mxu0 0.0
    %1508 = vmatpush1.msra.mxu0 %v1472
    %1509 = vmatprep.subr.mxu0 0.0
    %1510 = vmatpush1.msra.mxu0 %v1471
    %1511 = vmatprep.subr.mxu0 0.0
    %1512 = vmatpush2.msra.mxu0 0.0
    %1513 = vmatprep.subr.mxu0 0.0
    %1514 = vmatpush2.msra.mxu0 0.0
    %1515 = vmatprep.subr.mxu0 0.0
    %1516 = vmatpush2.msra.mxu0 0.0
    %1517 = vmatprep.subr.mxu0 0.0
    %1518 = vmatpush2.msra.mxu0 0.0
    %1519 = vmatprep.subr.mxu0 0.0
    %1520 = vmatpush2.msra.mxu0 0.0
    %1521 = vmatprep.subr.mxu0 0.0
    %1522 = vmatpush2.msra.mxu0 0.0
    %1523 = vmatprep.subr.mxu0 0.0
    %1524 = vmatpush2.msra.mxu0 0.0
    %1525 = vmatprep.subr.mxu0 0.0
    %1526 = vmatpush2.msra.mxu0 0.0
    %1527 = vmatprep.subr.mxu0 0.0
    %1528 = vmatpush2.msra.mxu0 0.0
    %1529 = vmatprep.subr.mxu0 0.0
    %1530 = vmatpush2.msra.mxu0 0.0
    %1531 = vmatprep.subr.mxu0 0.0
    %1532 = vmatpush2.msra.mxu0 0.0
    %1533 = vmatprep.subr.mxu0 0.0
    %1534 = vmatpush2.msra.mxu0 0.0
    %1535 = vmatprep.subr.mxu0 0.0
    %1536 = vmatpush2.msra.mxu0 0.0
    %1537 = vmatprep.subr.mxu0 0.0
    %1538 = vmatpush2.msra.mxu0 0.0
    %1539 = vmatprep.subr.mxu0 0.0
    %1540 = vmatpush2.msra.mxu0 0.0
    %1541 = vmatprep.subr.mxu0 0.0
    %1542 = vmatpush2.msra.mxu0 0.0
    %1543 = vmatprep.mubr.f32.mxu0 0.0
    %1544 = vmatmul.mubr.f32.gmra.mxu0 %v1369
    %v1545 = vpop.f32.mrf.mxu0
    %v1546 = vadd.f32 0.0, %v1545
    %v1547 = vpop.f32.mrf.mxu0
    %1548 = vdwg.mxu0
    %1550 = vset.pattern.permute.xlu0 0
    %1551 = vperm.xlu0 %1550, %v1446
    %v1552 = vpop.permute.xlu0 %1551
    %v1554 = vmul.f32 %v1546, %v1552
    %vm1555 = vcmask 31744
    %v1557 = vsel %vm1555, %v1330, 0
    %v1560 = vsel %vm1555, %v1331, 0
    %v1563 = vsel %vm1555, %v1332, 0
    %v1566 = vsel %vm1555, %v1333, 0
    %v1569 = vsel %vm1555, %v1334, 0
    %v1571 = vsel %vm1371, %v1446, 0
    %1573 = vmatprep.subr.mxu0 0.0
    %1574 = vmatpush1.msra.mxu0 0.0
    %1575 = vmatprep.subr.mxu0 0.0
    %1576 = vmatpush1.msra.mxu0 0.0
    %1577 = vmatprep.subr.mxu0 0.0
    %1578 = vmatpush1.msra.mxu0 0.0
    %1579 = vmatprep.subr.mxu0 0.0
    %1580 = vmatpush1.msra.mxu0 0.0
    %1581 = vmatprep.subr.mxu0 0.0
    %1582 = vmatpush1.msra.mxu0 0.0
    %1583 = vmatprep.subr.mxu0 0.0
    %1584 = vmatpush1.msra.mxu0 0.0
    %1585 = vmatprep.subr.mxu0 0.0
    %1586 = vmatpush1.msra.mxu0 0.0
    %1587 = vmatprep.subr.mxu0 0.0
    %1588 = vmatpush1.msra.mxu0 0.0
    %1589 = vmatprep.subr.mxu0 0.0
    %1590 = vmatpush1.msra.mxu0 0.0
    %1591 = vmatprep.subr.mxu0 0.0
    %1592 = vmatpush1.msra.mxu0 0.0
    %1593 = vmatprep.subr.mxu0 0.0
    %1594 = vmatpush1.msra.mxu0 0.0
    %1595 = vmatprep.subr.mxu0 0.0
    %1596 = vmatpush1.msra.mxu0 0.0
    %1597 = vmatprep.subr.mxu0 0.0
    %1598 = vmatpush1.msra.mxu0 0.0
    %1599 = vmatprep.subr.mxu0 0.0
    %1600 = vmatpush1.msra.mxu0 0.0
    %1601 = vmatprep.subr.mxu0 0.0
    %1602 = vmatpush1.msra.mxu0 0.0
    %1603 = vmatprep.subr.mxu0 0.0
    %1604 = vmatpush1.msra.mxu0 %v1571
    %1605 = vmatprep.subr.mxu0 0.0
    %1606 = vmatpush2.msra.mxu0 0.0
    %1607 = vmatprep.subr.mxu0 0.0
    %1608 = vmatpush2.msra.mxu0 0.0
    %1609 = vmatprep.subr.mxu0 0.0
    %1610 = vmatpush2.msra.mxu0 0.0
    %1611 = vmatprep.subr.mxu0 0.0
    %1612 = vmatpush2.msra.mxu0 0.0
    %1613 = vmatprep.subr.mxu0 0.0
    %1614 = vmatpush2.msra.mxu0 0.0
    %1615 = vmatprep.subr.mxu0 0.0
    %1616 = vmatpush2.msra.mxu0 0.0
    %1617 = vmatprep.subr.mxu0 0.0
    %1618 = vmatpush2.msra.mxu0 0.0
    %1619 = vmatprep.subr.mxu0 0.0
    %1620 = vmatpush2.msra.mxu0 0.0
    %1621 = vmatprep.subr.mxu0 0.0
    %1622 = vmatpush2.msra.mxu0 0.0
    %1623 = vmatprep.subr.mxu0 0.0
    %1624 = vmatpush2.msra.mxu0 0.0
    %1625 = vmatprep.subr.mxu0 0.0
    %1626 = vmatpush2.msra.mxu0 0.0
    %1627 = vmatprep.subr.mxu0 0.0
    %1628 = vmatpush2.msra.mxu0 0.0
    %1629 = vmatprep.subr.mxu0 0.0
    %1630 = vmatpush2.msra.mxu0 0.0
    %1631 = vmatprep.subr.mxu0 0.0
    %1632 = vmatpush2.msra.mxu0 0.0
    %1633 = vmatprep.subr.mxu0 0.0
    %1634 = vmatpush2.msra.mxu0 0.0
    %1635 = vmatprep.subr.mxu0 0.0
    %1636 = vmatpush2.msra.mxu0 0.0
    %1637 = vmatprep.mubr.f32.mxu0 0.0
    %1638 = vmatmul.mubr.f32.gmra.mxu0 %v1557
    %v1639 = vpop.f32.mrf.mxu0
    %v1640 = vadd.f32 0.0, %v1639
    %v1641 = vpop.f32.mrf.mxu0
    %1642 = vmatprep.mubr.f32.mxu0 0.0
    %1643 = vmatmul.mubr.f32.gmra.mxu0 %v1560
    %v1644 = vpop.f32.mrf.mxu0
    %v1645 = vadd.f32 0.0, %v1644
    %v1646 = vpop.f32.mrf.mxu0
    %1647 = vmatprep.mubr.f32.mxu0 0.0
    %1648 = vmatmul.mubr.f32.gmra.mxu0 %v1563
    %v1649 = vpop.f32.mrf.mxu0
    %v1650 = vadd.f32 0.0, %v1649
    %v1651 = vpop.f32.mrf.mxu0
    %1652 = vmatprep.mubr.f32.mxu0 0.0
    %1653 = vmatmul.mubr.f32.gmra.mxu0 %v1566
    %v1654 = vpop.f32.mrf.mxu0
    %v1655 = vadd.f32 0.0, %v1654
    %v1656 = vpop.f32.mrf.mxu0
    %1657 = vmatprep.mubr.f32.mxu0 0.0
    %1658 = vmatmul.mubr.f32.gmra.mxu0 %v1569
    %v1659 = vpop.f32.mrf.mxu0
    %v1660 = vadd.f32 0.0, %v1659
    %v1661 = vpop.f32.mrf.mxu0
    %1662 = vdwg.mxu0
    %v1663 = vmul.f32 %v1358, %v1640
    %v1664 = vmul.f32 %v1360, %v1645
    %v1665 = vmul.f32 %v1362, %v1650
    %v1666 = vmul.f32 %v1364, %v1655
    %v1667 = vmul.f32 %v1366, %v1660
    %1668 = vst.msk [vmem:[%s18] sm:$0xff] %vm1335, %v1663
    %1669 = vst.msk [vmem:[%s18 + $0x8] sm:$0xff] %vm1335, %v1664
    %1670 = vst.msk [vmem:[%s18 + $0x10] sm:$0xff] %vm1335, %v1665
    %1671 = vst.msk [vmem:[%s18 + $0x18] sm:$0xff] %vm1335, %v1666
    %1672 = vst.msk [vmem:[%s18 + $0x20] sm:$0xf] %vm1340, %v1667
    %1673 = vrot.lane.b32.xlu0 %v1052, 64
    %v1674 = vpop.permute.xlu0 %1673
    %1675 = vrot.lane.b32.xlu0 %v1082, 64
    %v1676 = vpop.permute.xlu0 %1675
    %1677 = vrot.lane.b32.xlu0 %v1083, 64
    %v1678 = vpop.permute.xlu0 %1677
    %1679 = vrot.lane.b32.xlu0 %v1084, 64
    %v1680 = vpop.permute.xlu0 %1679
    %1681 = vrot.lane.b32.xlu0 %v1079, 64
    %v1682 = vpop.permute.xlu0 %1681
    %v1688 = vsel %vm311, %v1052, %v1674
    %v1689 = vsel %vm311, %v1082, %v1676
    %v1690 = vsel %vm311, %v1083, %v1678
    %v1691 = vsel %vm311, %v1084, %v1680
    %v1692 = vsel %vm311, %v1079, %v1682
    %v1693 = vld [vmem:[%s10] sm:$0xff]
    %v1694 = vld [vmem:[%s10 + $0x8] sm:$0xff]
    %v1695 = vld [vmem:[%s10 + $0x10] sm:$0xff]
    %v1696 = vld [vmem:[%s10 + $0x18] sm:$0xff]
    %v1697 = vld [vmem:[%s10 + $0x20] sm:$0xff]
    %v1698 = vld [vmem:[%s10 + $0x28] sm:$0xff]
    %v1699 = vld [vmem:[%s10 + $0x30] sm:$0xff]
    %v1700 = vld [vmem:[%s10 + $0x38] sm:$0xff]
    %v1701 = vld [vmem:[%s10 + $0x40] sm:$0xff]
    %v1702 = vld [vmem:[%s10 + $0x48] sm:$0xff]
    %v1703 = vld [vmem:[%s10 + $0x50] sm:$0xff]
    %v1704 = vld [vmem:[%s10 + $0x58] sm:$0xff]
    %v1705 = vld [vmem:[%s10 + $0x60] sm:$0xff]
    %v1706 = vld [vmem:[%s10 + $0x68] sm:$0xff]
    %v1707 = vld [vmem:[%s10 + $0x70] sm:$0xff]
    %v1708 = vld [vmem:[%s10 + $0x78] sm:$0xff]
    %v1709 = vld [vmem:[%s10 + $0x80] sm:$0xff]
    %v1710 = vld [vmem:[%s10 + $0x88] sm:$0xff]
    %v1711 = vld [vmem:[%s10 + $0x90] sm:$0xff]
    %v1712 = vld [vmem:[%s10 + $0x98] sm:$0xff]
    %v1713 = vld [vmem:[%s10 + $0xa0] sm:$0xf]
    %v1714 = vld [vmem:[%s10 + $0xa8] sm:$0xf]
    %v1715 = vld [vmem:[%s10 + $0xb0] sm:$0xf]
    %v1716 = vld [vmem:[%s10 + $0xb8] sm:$0xf]
    %v1717 = vld [vmem:[%s10 + $0xc0] sm:$0xf]
    %v1718 = vmul.f32 %v1688, %v1693
    %v1719 = vmul.f32 %v1688, %v1694
    %v1720 = vmul.f32 %v1688, %v1695
    %v1721 = vmul.f32 %v1688, %v1696
    %v1722 = vmul.f32 %v1052, %v1697
    %v1723 = vmul.f32 %v1689, %v1698
    %v1724 = vmul.f32 %v1689, %v1699
    %v1725 = vmul.f32 %v1689, %v1700
    %v1726 = vmul.f32 %v1689, %v1701
    %v1727 = vmul.f32 %v1082, %v1702
    %v1728 = vmul.f32 %v1690, %v1703
    %v1729 = vmul.f32 %v1690, %v1704
    %v1730 = vmul.f32 %v1690, %v1705
    %v1731 = vmul.f32 %v1690, %v1706
    %v1732 = vmul.f32 %v1083, %v1707
    %v1733 = vmul.f32 %v1691, %v1708
    %v1734 = vmul.f32 %v1691, %v1709
    %v1735 = vmul.f32 %v1691, %v1710
    %v1736 = vmul.f32 %v1691, %v1711
    %v1737 = vmul.f32 %v1084, %v1712
    %v1738 = vmul.f32 %v1692, %v1713
    %v1739 = vmul.f32 %v1692, %v1714
    %v1740 = vmul.f32 %v1692, %v1715
    %v1741 = vmul.f32 %v1692, %v1716
    %v1742 = vmul.f32 %v1079, %v1717
    %v1744 = vsel %vm1371, %v1738, 0
    %v1747 = vsel %vm1371, %v1739, 0
    %v1750 = vsel %vm1371, %v1740, 0
    %v1753 = vsel %vm1371, %v1741, 0
    %v1756 = vsel %vm1371, %v1742, 0
    %1758 = vmatprep.subr.mxu0 0.0
    %1759 = vmatpush1.msra.mxu0 0.0
    %1760 = vmatprep.subr.mxu0 0.0
    %1761 = vmatpush1.msra.mxu0 0.0
    %1762 = vmatprep.subr.mxu0 0.0
    %1763 = vmatpush1.msra.mxu0 0.0
    %1764 = vmatprep.subr.mxu0 0.0
    %1765 = vmatpush1.msra.mxu0 0.0
    %1766 = vmatprep.subr.mxu0 0.0
    %1767 = vmatpush1.msra.mxu0 0.0
    %1768 = vmatprep.subr.mxu0 0.0
    %1769 = vmatpush1.msra.mxu0 0.0
    %1770 = vmatprep.subr.mxu0 0.0
    %1771 = vmatpush1.msra.mxu0 0.0
    %1772 = vmatprep.subr.mxu0 0.0
    %1773 = vmatpush1.msra.mxu0 0.0
    %1774 = vmatprep.subr.mxu0 0.0
    %1775 = vmatpush1.msra.mxu0 0.0
    %1776 = vmatprep.subr.mxu0 0.0
    %1777 = vmatpush1.msra.mxu0 0.0
    %1778 = vmatprep.subr.mxu0 0.0
    %1779 = vmatpush1.msra.mxu0 0.0
    %1780 = vmatprep.subr.mxu0 %v1747
    %1781 = vmatpush1.msra.mxu0 %v1744
    %1782 = vmatprep.subr.mxu0 %v1734
    %1783 = vmatpush1.msra.mxu0 %v1733
    %1784 = vmatprep.subr.mxu0 %v1729
    %1785 = vmatpush1.msra.mxu0 %v1728
    %1786 = vmatprep.subr.mxu0 %v1724
    %1787 = vmatpush1.msra.mxu0 %v1723
    %1788 = vmatprep.subr.mxu0 %v1719
    %1789 = vmatpush1.msra.mxu0 %v1718
    %1790 = vmatprep.subr.mxu0 0.0
    %1791 = vmatpush2.msra.mxu0 0.0
    %1792 = vmatprep.subr.mxu0 0.0
    %1793 = vmatpush2.msra.mxu0 0.0
    %1794 = vmatprep.subr.mxu0 0.0
    %1795 = vmatpush2.msra.mxu0 0.0
    %1796 = vmatprep.subr.mxu0 0.0
    %1797 = vmatpush2.msra.mxu0 0.0
    %1798 = vmatprep.subr.mxu0 0.0
    %1799 = vmatpush2.msra.mxu0 0.0
    %1800 = vmatprep.subr.mxu0 0.0
    %1801 = vmatpush2.msra.mxu0 0.0
    %1802 = vmatprep.subr.mxu0 0.0
    %1803 = vmatpush2.msra.mxu0 0.0
    %1804 = vmatprep.subr.mxu0 0.0
    %1805 = vmatpush2.msra.mxu0 0.0
    %1806 = vmatprep.subr.mxu0 0.0
    %1807 = vmatpush2.msra.mxu0 0.0
    %1808 = vmatprep.subr.mxu0 0.0
    %1809 = vmatpush2.msra.mxu0 0.0
    %1810 = vmatprep.subr.mxu0 0.0
    %1811 = vmatpush2.msra.mxu0 0.0
    %1812 = vmatprep.subr.mxu0 0.0
    %1813 = vmatpush2.msra.mxu0 0.0
    %1814 = vmatprep.subr.mxu0 0.0
    %1815 = vmatpush2.msra.mxu0 0.0
    %1816 = vmatprep.subr.mxu0 0.0
    %1817 = vmatpush2.msra.mxu0 0.0
    %1818 = vmatprep.subr.mxu0 0.0
    %1819 = vmatpush2.msra.mxu0 0.0
    %1820 = vmatprep.subr.mxu0 0.0
    %1821 = vmatpush2.msra.mxu0 0.0
    %1822 = vmatprep.mubr.f32.mxu0 0.0
    %1823 = vmatmul.mubr.f32.gmra.mxu0 %v1369
    %v1824 = vpop.f32.mrf.mxu0
    %v1825 = vadd.f32 0.0, %v1824
    %v1826 = vpop.f32.mrf.mxu0
    %v1827 = vadd.f32 0.0, %v1826
    %1828 = vdwg.mxu0
    %1829 = vmatprep.subr.mxu0 0.0
    %1830 = vmatpush1.msra.mxu0 0.0
    %1831 = vmatprep.subr.mxu0 0.0
    %1832 = vmatpush1.msra.mxu0 0.0
    %1833 = vmatprep.subr.mxu0 0.0
    %1834 = vmatpush1.msra.mxu0 0.0
    %1835 = vmatprep.subr.mxu0 0.0
    %1836 = vmatpush1.msra.mxu0 0.0
    %1837 = vmatprep.subr.mxu0 0.0
    %1838 = vmatpush1.msra.mxu0 0.0
    %1839 = vmatprep.subr.mxu0 0.0
    %1840 = vmatpush1.msra.mxu0 0.0
    %1841 = vmatprep.subr.mxu0 0.0
    %1842 = vmatpush1.msra.mxu0 0.0
    %1843 = vmatprep.subr.mxu0 0.0
    %1844 = vmatpush1.msra.mxu0 0.0
    %1845 = vmatprep.subr.mxu0 0.0
    %1846 = vmatpush1.msra.mxu0 0.0
    %1847 = vmatprep.subr.mxu0 0.0
    %1848 = vmatpush1.msra.mxu0 0.0
    %1849 = vmatprep.subr.mxu0 0.0
    %1850 = vmatpush1.msra.mxu0 0.0
    %1851 = vmatprep.subr.mxu0 %v1753
    %1852 = vmatpush1.msra.mxu0 %v1750
    %1853 = vmatprep.subr.mxu0 %v1736
    %1854 = vmatpush1.msra.mxu0 %v1735
    %1855 = vmatprep.subr.mxu0 %v1731
    %1856 = vmatpush1.msra.mxu0 %v1730
    %1857 = vmatprep.subr.mxu0 %v1726
    %1858 = vmatpush1.msra.mxu0 %v1725
    %1859 = vmatprep.subr.mxu0 %v1721
    %1860 = vmatpush1.msra.mxu0 %v1720
    %1861 = vmatprep.subr.mxu0 0.0
    %1862 = vmatpush2.msra.mxu0 0.0
    %1863 = vmatprep.subr.mxu0 0.0
    %1864 = vmatpush2.msra.mxu0 0.0
    %1865 = vmatprep.subr.mxu0 0.0
    %1866 = vmatpush2.msra.mxu0 0.0
    %1867 = vmatprep.subr.mxu0 0.0
    %1868 = vmatpush2.msra.mxu0 0.0
    %1869 = vmatprep.subr.mxu0 0.0
    %1870 = vmatpush2.msra.mxu0 0.0
    %1871 = vmatprep.subr.mxu0 0.0
    %1872 = vmatpush2.msra.mxu0 0.0
    %1873 = vmatprep.subr.mxu0 0.0
    %1874 = vmatpush2.msra.mxu0 0.0
    %1875 = vmatprep.subr.mxu0 0.0
    %1876 = vmatpush2.msra.mxu0 0.0
    %1877 = vmatprep.subr.mxu0 0.0
    %1878 = vmatpush2.msra.mxu0 0.0
    %1879 = vmatprep.subr.mxu0 0.0
    %1880 = vmatpush2.msra.mxu0 0.0
    %1881 = vmatprep.subr.mxu0 0.0
    %1882 = vmatpush2.msra.mxu0 0.0
    %1883 = vmatprep.subr.mxu0 0.0
    %1884 = vmatpush2.msra.mxu0 0.0
    %1885 = vmatprep.subr.mxu0 0.0
    %1886 = vmatpush2.msra.mxu0 0.0
    %1887 = vmatprep.subr.mxu0 0.0
    %1888 = vmatpush2.msra.mxu0 0.0
    %1889 = vmatprep.subr.mxu0 0.0
    %1890 = vmatpush2.msra.mxu0 0.0
    %1891 = vmatprep.subr.mxu0 0.0
    %1892 = vmatpush2.msra.mxu0 0.0
    %1893 = vmatprep.mubr.f32.mxu0 0.0
    %1894 = vmatmul.mubr.f32.gmra.mxu0 %v1369
    %v1895 = vpop.f32.mrf.mxu0
    %v1896 = vadd.f32 0.0, %v1895
    %v1897 = vpop.f32.mrf.mxu0
    %v1898 = vadd.f32 0.0, %v1897
    %1899 = vdwg.mxu0
    %1900 = vmatprep.subr.mxu0 0.0
    %1901 = vmatpush1.msra.mxu0 0.0
    %1902 = vmatprep.subr.mxu0 0.0
    %1903 = vmatpush1.msra.mxu0 0.0
    %1904 = vmatprep.subr.mxu0 0.0
    %1905 = vmatpush1.msra.mxu0 0.0
    %1906 = vmatprep.subr.mxu0 0.0
    %1907 = vmatpush1.msra.mxu0 0.0
    %1908 = vmatprep.subr.mxu0 0.0
    %1909 = vmatpush1.msra.mxu0 0.0
    %1910 = vmatprep.subr.mxu0 0.0
    %1911 = vmatpush1.msra.mxu0 0.0
    %1912 = vmatprep.subr.mxu0 0.0
    %1913 = vmatpush1.msra.mxu0 0.0
    %1914 = vmatprep.subr.mxu0 0.0
    %1915 = vmatpush1.msra.mxu0 0.0
    %1916 = vmatprep.subr.mxu0 0.0
    %1917 = vmatpush1.msra.mxu0 0.0
    %1918 = vmatprep.subr.mxu0 0.0
    %1919 = vmatpush1.msra.mxu0 0.0
    %1920 = vmatprep.subr.mxu0 0.0
    %1921 = vmatpush1.msra.mxu0 0.0
    %1922 = vmatprep.subr.mxu0 0.0
    %1923 = vmatpush1.msra.mxu0 %v1756
    %1924 = vmatprep.subr.mxu0 0.0
    %1925 = vmatpush1.msra.mxu0 %v1737
    %1926 = vmatprep.subr.mxu0 0.0
    %1927 = vmatpush1.msra.mxu0 %v1732
    %1928 = vmatprep.subr.mxu0 0.0
    %1929 = vmatpush1.msra.mxu0 %v1727
    %1930 = vmatprep.subr.mxu0 0.0
    %1931 = vmatpush1.msra.mxu0 %v1722
    %1932 = vmatprep.subr.mxu0 0.0
    %1933 = vmatpush2.msra.mxu0 0.0
    %1934 = vmatprep.subr.mxu0 0.0
    %1935 = vmatpush2.msra.mxu0 0.0
    %1936 = vmatprep.subr.mxu0 0.0
    %1937 = vmatpush2.msra.mxu0 0.0
    %1938 = vmatprep.subr.mxu0 0.0
    %1939 = vmatpush2.msra.mxu0 0.0
    %1940 = vmatprep.subr.mxu0 0.0
    %1941 = vmatpush2.msra.mxu0 0.0
    %1942 = vmatprep.subr.mxu0 0.0
    %1943 = vmatpush2.msra.mxu0 0.0
    %1944 = vmatprep.subr.mxu0 0.0
    %1945 = vmatpush2.msra.mxu0 0.0
    %1946 = vmatprep.subr.mxu0 0.0
    %1947 = vmatpush2.msra.mxu0 0.0
    %1948 = vmatprep.subr.mxu0 0.0
    %1949 = vmatpush2.msra.mxu0 0.0
    %1950 = vmatprep.subr.mxu0 0.0
    %1951 = vmatpush2.msra.mxu0 0.0
    %1952 = vmatprep.subr.mxu0 0.0
    %1953 = vmatpush2.msra.mxu0 0.0
    %1954 = vmatprep.subr.mxu0 0.0
    %1955 = vmatpush2.msra.mxu0 0.0
    %1956 = vmatprep.subr.mxu0 0.0
    %1957 = vmatpush2.msra.mxu0 0.0
    %1958 = vmatprep.subr.mxu0 0.0
    %1959 = vmatpush2.msra.mxu0 0.0
    %1960 = vmatprep.subr.mxu0 0.0
    %1961 = vmatpush2.msra.mxu0 0.0
    %1962 = vmatprep.subr.mxu0 0.0
    %1963 = vmatpush2.msra.mxu0 0.0
    %1964 = vmatprep.mubr.f32.mxu0 0.0
    %1965 = vmatmul.mubr.f32.gmra.mxu0 %v1369
    %v1966 = vpop.f32.mrf.mxu0
    %v1967 = vadd.f32 0.0, %v1966
    %v1968 = vpop.f32.mrf.mxu0
    %1969 = vdwg.mxu0
    %1975 = vrot.lane.b32.xlu0 %v1825, 64
    %v1976 = vpop.permute.xlu0 %1975
    %1977 = vrot.lane.b32.xlu0 %v1827, 64
    %v1978 = vpop.permute.xlu0 %1977
    %1979 = vrot.lane.b32.xlu0 %v1896, 64
    %v1980 = vpop.permute.xlu0 %1979
    %1981 = vrot.lane.b32.xlu0 %v1898, 64
    %v1982 = vpop.permute.xlu0 %1981
    %1983 = vrot.lane.b32.xlu0 %v1967, 64
    %v1984 = vpop.permute.xlu0 %1983
    %v1985 = vsel %vm311, %v1976, %v1978
    %v1986 = vsel %vm311, %v1978, %v1980
    %v1987 = vsel %vm311, %v1980, %v1982
    %v1988 = vsel %vm311, %v1982, %v1984
    %v1994 = vsel %vm311, %v1554, %v1976
    %v1995 = vld [vmem:[%s11] sm:$0xff]
    %v1996 = vld [vmem:[%s11 + $0x8] sm:$0xff]
    %v1997 = vld [vmem:[%s11 + $0x10] sm:$0xff]
    %v1998 = vld [vmem:[%s11 + $0x18] sm:$0xff]
    %v1999 = vld [vmem:[%s11 + $0x20] sm:$0xff]
    %v2000 = vld [vmem:[%s11 + $0x28] sm:$0xff]
    %v2001 = vld [vmem:[%s11 + $0x30] sm:$0xff]
    %v2002 = vld [vmem:[%s11 + $0x38] sm:$0xff]
    %v2003 = vld [vmem:[%s11 + $0x40] sm:$0xff]
    %v2004 = vld [vmem:[%s11 + $0x48] sm:$0xff]
    %v2005 = vld [vmem:[%s11 + $0x50] sm:$0xff]
    %v2006 = vld [vmem:[%s11 + $0x58] sm:$0xff]
    %v2007 = vld [vmem:[%s11 + $0x60] sm:$0xff]
    %v2008 = vld [vmem:[%s11 + $0x68] sm:$0xff]
    %v2009 = vld [vmem:[%s11 + $0x70] sm:$0xff]
    %v2010 = vld [vmem:[%s11 + $0x78] sm:$0xff]
    %v2011 = vld [vmem:[%s11 + $0x80] sm:$0xff]
    %v2012 = vld [vmem:[%s11 + $0x88] sm:$0xff]
    %v2013 = vld [vmem:[%s11 + $0x90] sm:$0xff]
    %v2014 = vld [vmem:[%s11 + $0x98] sm:$0xff]
    %v2015 = vld [vmem:[%s11 + $0xa0] sm:$0xff]
    %v2016 = vld [vmem:[%s11 + $0xa8] sm:$0xff]
    %v2017 = vld [vmem:[%s11 + $0xb0] sm:$0xff]
    %v2018 = vld [vmem:[%s11 + $0xb8] sm:$0xff]
    %v2019 = vld [vmem:[%s11 + $0xc0] sm:$0xff]
    %v2020 = vld [vmem:[%s11 + $0xc8] sm:$0xff]
    %v2021 = vld [vmem:[%s11 + $0xd0] sm:$0xff]
    %v2022 = vld [vmem:[%s11 + $0xd8] sm:$0xff]
    %v2023 = vld [vmem:[%s11 + $0xe0] sm:$0xff]
    %v2024 = vld [vmem:[%s11 + $0xe8] sm:$0xff]
    %v2025 = vld [vmem:[%s11 + $0xf0] sm:$0xff]
    %v2026 = vld [vmem:[%s11 + $0xf8] sm:$0xff]
    %v2027 = vld [vmem:[%s11 + $0x100] sm:$0xff]
    %v2028 = vld [vmem:[%s11 + $0x108] sm:$0xff]
    %v2029 = vld [vmem:[%s11 + $0x110] sm:$0xff]
    %v2030 = vld [vmem:[%s11 + $0x118] sm:$0xff]
    %v2031 = vld [vmem:[%s11 + $0x120] sm:$0xff]
    %v2032 = vld [vmem:[%s11 + $0x128] sm:$0xff]
    %v2033 = vld [vmem:[%s11 + $0x130] sm:$0xff]
    %v2034 = vld [vmem:[%s11 + $0x138] sm:$0xff]
    %v2035 = vld [vmem:[%s11 + $0x140] sm:$0xff]
    %v2036 = vld [vmem:[%s11 + $0x148] sm:$0xff]
    %v2037 = vld [vmem:[%s11 + $0x150] sm:$0xff]
    %v2038 = vld [vmem:[%s11 + $0x158] sm:$0xff]
    %v2039 = vld [vmem:[%s11 + $0x160] sm:$0xff]
    %v2040 = vld [vmem:[%s11 + $0x168] sm:$0xff]
    %v2041 = vld [vmem:[%s11 + $0x170] sm:$0xff]
    %v2042 = vld [vmem:[%s11 + $0x178] sm:$0xff]
    %v2043 = vld [vmem:[%s11 + $0x180] sm:$0xff]
    %v2044 = vld [vmem:[%s11 + $0x188] sm:$0xff]
    %v2045 = vld [vmem:[%s11 + $0x190] sm:$0xff]
    %v2046 = vld [vmem:[%s11 + $0x198] sm:$0xff]
    %v2047 = vld [vmem:[%s11 + $0x1a0] sm:$0xff]
    %v2048 = vld [vmem:[%s11 + $0x1a8] sm:$0xff]
    %v2049 = vld [vmem:[%s11 + $0x1b0] sm:$0xff]
    %v2050 = vld [vmem:[%s11 + $0x1b8] sm:$0xff]
    %v2051 = vld [vmem:[%s11 + $0x1c0] sm:$0xff]
    %v2052 = vld [vmem:[%s11 + $0x1c8] sm:$0xff]
    %v2053 = vld [vmem:[%s11 + $0x1d0] sm:$0xff]
    %v2054 = vld [vmem:[%s11 + $0x1d8] sm:$0xff]
    %v2055 = vld [vmem:[%s11 + $0x1e0] sm:$0xff]
    %v2056 = vld [vmem:[%s11 + $0x1e8] sm:$0xff]
    %v2057 = vld [vmem:[%s11 + $0x1f0] sm:$0xff]
    %v2058 = vld [vmem:[%s11 + $0x1f8] sm:$0xff]
    %v2059 = vld [vmem:[%s11 + $0x200] sm:$0xff]
    %v2060 = vld [vmem:[%s11 + $0x208] sm:$0xff]
    %v2061 = vld [vmem:[%s11 + $0x210] sm:$0xff]
    %v2062 = vld [vmem:[%s11 + $0x218] sm:$0xff]
    %v2063 = vld [vmem:[%s11 + $0x220] sm:$0xff]
    %v2064 = vld [vmem:[%s11 + $0x228] sm:$0xff]
    %v2065 = vld [vmem:[%s11 + $0x230] sm:$0xff]
    %v2066 = vld [vmem:[%s11 + $0x238] sm:$0xff]
    %v2067 = vld [vmem:[%s11 + $0x240] sm:$0xff]
    %v2068 = vld [vmem:[%s11 + $0x248] sm:$0xff]
    %v2069 = vld [vmem:[%s11 + $0x250] sm:$0xff]
    %v2070 = vld [vmem:[%s11 + $0x258] sm:$0xff]
    %v2071 = vld [vmem:[%s11 + $0x260] sm:$0xff]
    %v2072 = vld [vmem:[%s11 + $0x268] sm:$0xff]
    %v2073 = vld [vmem:[%s11 + $0x270] sm:$0xff]
    %v2074 = vld [vmem:[%s11 + $0x278] sm:$0xff]
    %v2075 = vld [vmem:[%s12] sm:$0x1]
    %v2077 = vlaneseq
    %v2078 = vshrl.u32 %v2077, 7
    %v2079 = vsub.s32 0, %v2078
    %v2080 = vrot.slane %v2075, %v2079
    %2082 = vmatprep.subr.mxu0 0.0
    %2083 = vmatpush1.msra.mxu0 %v2010
    %2084 = vmatprep.subr.mxu0 0.0
    %2085 = vmatpush1.msra.mxu0 %v2009
    %2086 = vmatprep.subr.mxu0 0.0
    %2087 = vmatpush1.msra.mxu0 %v2008
    %2088 = vmatprep.subr.mxu0 0.0
    %2089 = vmatpush1.msra.mxu0 %v2007
    %2090 = vmatprep.subr.mxu0 0.0
    %2091 = vmatpush1.msra.mxu0 %v2006
    %2092 = vmatprep.subr.mxu0 0.0
    %2093 = vmatpush1.msra.mxu0 %v2005
    %2094 = vmatprep.subr.mxu0 0.0
    %2095 = vmatpush1.msra.mxu0 %v2004
    %2096 = vmatprep.subr.mxu0 0.0
    %2097 = vmatpush1.msra.mxu0 %v2003
    %2098 = vmatprep.subr.mxu0 0.0
    %2099 = vmatpush1.msra.mxu0 %v2002
    %2100 = vmatprep.subr.mxu0 0.0
    %2101 = vmatpush1.msra.mxu0 %v2001
    %2102 = vmatprep.subr.mxu0 0.0
    %2103 = vmatpush1.msra.mxu0 %v2000
    %2104 = vmatprep.subr.mxu0 0.0
    %2105 = vmatpush1.msra.mxu0 %v1999
    %2106 = vmatprep.subr.mxu0 0.0
    %2107 = vmatpush1.msra.mxu0 %v1998
    %2108 = vmatprep.subr.mxu0 0.0
    %2109 = vmatpush1.msra.mxu0 %v1997
    %2110 = vmatprep.subr.mxu0 0.0
    %2111 = vmatpush1.msra.mxu0 %v1996
    %2112 = vmatprep.subr.mxu0 0.0
    %2113 = vmatpush1.msra.mxu0 %v1995
    %2114 = vmatprep.subr.mxu0 0.0
    %2115 = vmatpush2.msra.mxu0 %v2026
    %2116 = vmatprep.subr.mxu0 0.0
    %2117 = vmatpush2.msra.mxu0 %v2025
    %2118 = vmatprep.subr.mxu0 0.0
    %2119 = vmatpush2.msra.mxu0 %v2024
    %2120 = vmatprep.subr.mxu0 0.0
    %2121 = vmatpush2.msra.mxu0 %v2023
    %2122 = vmatprep.subr.mxu0 0.0
    %2123 = vmatpush2.msra.mxu0 %v2022
    %2124 = vmatprep.subr.mxu0 0.0
    %2125 = vmatpush2.msra.mxu0 %v2021
    %2126 = vmatprep.subr.mxu0 0.0
    %2127 = vmatpush2.msra.mxu0 %v2020
    %2128 = vmatprep.subr.mxu0 0.0
    %2129 = vmatpush2.msra.mxu0 %v2019
    %2130 = vmatprep.subr.mxu0 0.0
    %2131 = vmatpush2.msra.mxu0 %v2018
    %2132 = vmatprep.subr.mxu0 0.0
    %2133 = vmatpush2.msra.mxu0 %v2017
    %2134 = vmatprep.subr.mxu0 0.0
    %2135 = vmatpush2.msra.mxu0 %v2016
    %2136 = vmatprep.subr.mxu0 0.0
    %2137 = vmatpush2.msra.mxu0 %v2015
    %2138 = vmatprep.subr.mxu0 0.0
    %2139 = vmatpush2.msra.mxu0 %v2014
    %2140 = vmatprep.subr.mxu0 0.0
    %2141 = vmatpush2.msra.mxu0 %v2013
    %2142 = vmatprep.subr.mxu0 0.0
    %2143 = vmatpush2.msra.mxu0 %v2012
    %2144 = vmatprep.subr.mxu0 0.0
    %2145 = vmatpush2.msra.mxu0 %v2011
    %2146 = vmatprep.mubr.f32.mxu0 %v1985
    %2147 = vmatmul.mubr.f32.gmra.mxu0 %v1994
    %v2148 = vpop.f32.mrf.mxu0
    %v2149 = vadd.f32 %v2080, %v2148
    %v2150 = vpop.f32.mrf.mxu0
    %2151 = vdwg.mxu0
    %2152 = vmatprep.subr.mxu0 0.0
    %2153 = vmatpush1.msra.mxu0 %v2042
    %2154 = vmatprep.subr.mxu0 0.0
    %2155 = vmatpush1.msra.mxu0 %v2041
    %2156 = vmatprep.subr.mxu0 0.0
    %2157 = vmatpush1.msra.mxu0 %v2040
    %2158 = vmatprep.subr.mxu0 0.0
    %2159 = vmatpush1.msra.mxu0 %v2039
    %2160 = vmatprep.subr.mxu0 0.0
    %2161 = vmatpush1.msra.mxu0 %v2038
    %2162 = vmatprep.subr.mxu0 0.0
    %2163 = vmatpush1.msra.mxu0 %v2037
    %2164 = vmatprep.subr.mxu0 0.0
    %2165 = vmatpush1.msra.mxu0 %v2036
    %2166 = vmatprep.subr.mxu0 0.0
    %2167 = vmatpush1.msra.mxu0 %v2035
    %2168 = vmatprep.subr.mxu0 0.0
    %2169 = vmatpush1.msra.mxu0 %v2034
    %2170 = vmatprep.subr.mxu0 0.0
    %2171 = vmatpush1.msra.mxu0 %v2033
    %2172 = vmatprep.subr.mxu0 0.0
    %2173 = vmatpush1.msra.mxu0 %v2032
    %2174 = vmatprep.subr.mxu0 0.0
    %2175 = vmatpush1.msra.mxu0 %v2031
    %2176 = vmatprep.subr.mxu0 0.0
    %2177 = vmatpush1.msra.mxu0 %v2030
    %2178 = vmatprep.subr.mxu0 0.0
    %2179 = vmatpush1.msra.mxu0 %v2029
    %2180 = vmatprep.subr.mxu0 0.0
    %2181 = vmatpush1.msra.mxu0 %v2028
    %2182 = vmatprep.subr.mxu0 0.0
    %2183 = vmatpush1.msra.mxu0 %v2027
    %2184 = vmatprep.subr.mxu0 0.0
    %2185 = vmatpush2.msra.mxu0 %v2058
    %2186 = vmatprep.subr.mxu0 0.0
    %2187 = vmatpush2.msra.mxu0 %v2057
    %2188 = vmatprep.subr.mxu0 0.0
    %2189 = vmatpush2.msra.mxu0 %v2056
    %2190 = vmatprep.subr.mxu0 0.0
    %2191 = vmatpush2.msra.mxu0 %v2055
    %2192 = vmatprep.subr.mxu0 0.0
    %2193 = vmatpush2.msra.mxu0 %v2054
    %2194 = vmatprep.subr.mxu0 0.0
    %2195 = vmatpush2.msra.mxu0 %v2053
    %2196 = vmatprep.subr.mxu0 0.0
    %2197 = vmatpush2.msra.mxu0 %v2052
    %2198 = vmatprep.subr.mxu0 0.0
    %2199 = vmatpush2.msra.mxu0 %v2051
    %2200 = vmatprep.subr.mxu0 0.0
    %2201 = vmatpush2.msra.mxu0 %v2050
    %2202 = vmatprep.subr.mxu0 0.0
    %2203 = vmatpush2.msra.mxu0 %v2049
    %2204 = vmatprep.subr.mxu0 0.0
    %2205 = vmatpush2.msra.mxu0 %v2048
    %2206 = vmatprep.subr.mxu0 0.0
    %2207 = vmatpush2.msra.mxu0 %v2047
    %2208 = vmatprep.subr.mxu0 0.0
    %2209 = vmatpush2.msra.mxu0 %v2046
    %2210 = vmatprep.subr.mxu0 0.0
    %2211 = vmatpush2.msra.mxu0 %v2045
    %2212 = vmatprep.subr.mxu0 0.0
    %2213 = vmatpush2.msra.mxu0 %v2044
    %2214 = vmatprep.subr.mxu0 0.0
    %2215 = vmatpush2.msra.mxu0 %v2043
    %2216 = vmatprep.mubr.f32.mxu0 %v1987
    %2217 = vmatmul.mubr.f32.gmra.mxu0 %v1986
    %v2218 = vpop.f32.mrf.mxu0
    %v2219 = vadd.f32 %v2149, %v2218
    %v2220 = vpop.f32.mrf.mxu0
    %2221 = vdwg.mxu0
    %2222 = vmatprep.subr.mxu0 0.0
    %2223 = vmatpush1.msra.mxu0 %v2074
    %2224 = vmatprep.subr.mxu0 0.0
    %2225 = vmatpush1.msra.mxu0 %v2073
    %2226 = vmatprep.subr.mxu0 0.0
    %2227 = vmatpush1.msra.mxu0 %v2072
    %2228 = vmatprep.subr.mxu0 0.0
    %2229 = vmatpush1.msra.mxu0 %v2071
    %2230 = vmatprep.subr.mxu0 0.0
    %2231 = vmatpush1.msra.mxu0 %v2070
    %2232 = vmatprep.subr.mxu0 0.0
    %2233 = vmatpush1.msra.mxu0 %v2069
    %2234 = vmatprep.subr.mxu0 0.0
    %2235 = vmatpush1.msra.mxu0 %v2068
    %2236 = vmatprep.subr.mxu0 0.0
    %2237 = vmatpush1.msra.mxu0 %v2067
    %2238 = vmatprep.subr.mxu0 0.0
    %2239 = vmatpush1.msra.mxu0 %v2066
    %2240 = vmatprep.subr.mxu0 0.0
    %2241 = vmatpush1.msra.mxu0 %v2065
    %2242 = vmatprep.subr.mxu0 0.0
    %2243 = vmatpush1.msra.mxu0 %v2064
    %2244 = vmatprep.subr.mxu0 0.0
    %2245 = vmatpush1.msra.mxu0 %v2063
    %2246 = vmatprep.subr.mxu0 0.0
    %2247 = vmatpush1.msra.mxu0 %v2062
    %2248 = vmatprep.subr.mxu0 0.0
    %2249 = vmatpush1.msra.mxu0 %v2061
    %2250 = vmatprep.subr.mxu0 0.0
    %2251 = vmatpush1.msra.mxu0 %v2060
    %2252 = vmatprep.subr.mxu0 0.0
    %2253 = vmatpush1.msra.mxu0 %v2059
    %2254 = vmatprep.subr.mxu0 0.0
    %2255 = vmatpush2.msra.mxu0 0.0
    %2256 = vmatprep.subr.mxu0 0.0
    %2257 = vmatpush2.msra.mxu0 0.0
    %2258 = vmatprep.subr.mxu0 0.0
    %2259 = vmatpush2.msra.mxu0 0.0
    %2260 = vmatprep.subr.mxu0 0.0
    %2261 = vmatpush2.msra.mxu0 0.0
    %2262 = vmatprep.subr.mxu0 0.0
    %2263 = vmatpush2.msra.mxu0 0.0
    %2264 = vmatprep.subr.mxu0 0.0
    %2265 = vmatpush2.msra.mxu0 0.0
    %2266 = vmatprep.subr.mxu0 0.0
    %2267 = vmatpush2.msra.mxu0 0.0
    %2268 = vmatprep.subr.mxu0 0.0
    %2269 = vmatpush2.msra.mxu0 0.0
    %2270 = vmatprep.subr.mxu0 0.0
    %2271 = vmatpush2.msra.mxu0 0.0
    %2272 = vmatprep.subr.mxu0 0.0
    %2273 = vmatpush2.msra.mxu0 0.0
    %2274 = vmatprep.subr.mxu0 0.0
    %2275 = vmatpush2.msra.mxu0 0.0
    %2276 = vmatprep.subr.mxu0 0.0
    %2277 = vmatpush2.msra.mxu0 0.0
    %2278 = vmatprep.subr.mxu0 0.0
    %2279 = vmatpush2.msra.mxu0 0.0
    %2280 = vmatprep.subr.mxu0 0.0
    %2281 = vmatpush2.msra.mxu0 0.0
    %2282 = vmatprep.subr.mxu0 0.0
    %2283 = vmatpush2.msra.mxu0 0.0
    %2284 = vmatprep.subr.mxu0 0.0
    %2285 = vmatpush2.msra.mxu0 0.0
    %2286 = vmatprep.mubr.f32.mxu0 0.0
    %2287 = vmatmul.mubr.f32.gmra.mxu0 %v1988
    %v2288 = vpop.f32.mrf.mxu0
    %v2289 = vadd.f32 %v2219, %v2288
    %v2290 = vpop.f32.mrf.mxu0
    %2291 = vdwg.mxu0
    %v2292 = vmax.f32 %v2289, 0.0
    %v2293 = vld [vmem:[#allocation12] sm:$0xff]
    %v2294 = vld [vmem:[#allocation12 + $0x8] sm:$0xff]
    %v2295 = vld [vmem:[#allocation12 + $0x10] sm:$0xff]
    %v2296 = vld [vmem:[#allocation12 + $0x18] sm:$0xff]
    %v2297 = vld [vmem:[#allocation12 + $0x20] sm:$0xff]
    %v2298 = vld [vmem:[#allocation12 + $0x28] sm:$0xff]
    %v2299 = vld [vmem:[#allocation12 + $0x30] sm:$0xff]
    %v2300 = vld [vmem:[#allocation12 + $0x38] sm:$0xff]
    %v2301 = vld [vmem:[#allocation12 + $0x40] sm:$0xff]
    %v2302 = vld [vmem:[#allocation12 + $0x48] sm:$0xff]
    %v2303 = vld [vmem:[#allocation12 + $0x50] sm:$0xff]
    %v2304 = vld [vmem:[#allocation12 + $0x58] sm:$0xff]
    %v2305 = vld [vmem:[#allocation12 + $0x60] sm:$0xff]
    %v2306 = vld [vmem:[#allocation12 + $0x68] sm:$0xff]
    %v2307 = vld [vmem:[#allocation12 + $0x70] sm:$0xff]
    %v2308 = vld [vmem:[#allocation12 + $0x78] sm:$0xff]
    %v2309 = vld [vmem:[%s14] sm:$0x1]
    %v2311 = vlaneseq
    %v2312 = vshrl.u32 %v2311, 7
    %v2313 = vsub.s32 0, %v2312
    %v2314 = vrot.slane %v2309, %v2313
    %2316 = vmatprep.subr.mxu0 0.0
    %2317 = vmatpush1.msra.mxu0 %v2308
    %2318 = vmatprep.subr.mxu0 0.0
    %2319 = vmatpush1.msra.mxu0 %v2307
    %2320 = vmatprep.subr.mxu0 0.0
    %2321 = vmatpush1.msra.mxu0 %v2306
    %2322 = vmatprep.subr.mxu0 0.0
    %2323 = vmatpush1.msra.mxu0 %v2305
    %2324 = vmatprep.subr.mxu0 0.0
    %2325 = vmatpush1.msra.mxu0 %v2304
    %2326 = vmatprep.subr.mxu0 0.0
    %2327 = vmatpush1.msra.mxu0 %v2303
    %2328 = vmatprep.subr.mxu0 0.0
    %2329 = vmatpush1.msra.mxu0 %v2302
    %2330 = vmatprep.subr.mxu0 0.0
    %2331 = vmatpush1.msra.mxu0 %v2301
    %2332 = vmatprep.subr.mxu0 0.0
    %2333 = vmatpush1.msra.mxu0 %v2300
    %2334 = vmatprep.subr.mxu0 0.0
    %2335 = vmatpush1.msra.mxu0 %v2299
    %2336 = vmatprep.subr.mxu0 0.0
    %2337 = vmatpush1.msra.mxu0 %v2298
    %2338 = vmatprep.subr.mxu0 0.0
    %2339 = vmatpush1.msra.mxu0 %v2297
    %2340 = vmatprep.subr.mxu0 0.0
    %2341 = vmatpush1.msra.mxu0 %v2296
    %2342 = vmatprep.subr.mxu0 0.0
    %2343 = vmatpush1.msra.mxu0 %v2295
    %2344 = vmatprep.subr.mxu0 0.0
    %2345 = vmatpush1.msra.mxu0 %v2294
    %2346 = vmatprep.subr.mxu0 0.0
    %2347 = vmatpush1.msra.mxu0 %v2293
    %2348 = vmatprep.subr.mxu0 0.0
    %2349 = vmatpush2.msra.mxu0 0.0
    %2350 = vmatprep.subr.mxu0 0.0
    %2351 = vmatpush2.msra.mxu0 0.0
    %2352 = vmatprep.subr.mxu0 0.0
    %2353 = vmatpush2.msra.mxu0 0.0
    %2354 = vmatprep.subr.mxu0 0.0
    %2355 = vmatpush2.msra.mxu0 0.0
    %2356 = vmatprep.subr.mxu0 0.0
    %2357 = vmatpush2.msra.mxu0 0.0
    %2358 = vmatprep.subr.mxu0 0.0
    %2359 = vmatpush2.msra.mxu0 0.0
    %2360 = vmatprep.subr.mxu0 0.0
    %2361 = vmatpush2.msra.mxu0 0.0
    %2362 = vmatprep.subr.mxu0 0.0
    %2363 = vmatpush2.msra.mxu0 0.0
    %2364 = vmatprep.subr.mxu0 0.0
    %2365 = vmatpush2.msra.mxu0 0.0
    %2366 = vmatprep.subr.mxu0 0.0
    %2367 = vmatpush2.msra.mxu0 0.0
    %2368 = vmatprep.subr.mxu0 0.0
    %2369 = vmatpush2.msra.mxu0 0.0
    %2370 = vmatprep.subr.mxu0 0.0
    %2371 = vmatpush2.msra.mxu0 0.0
    %2372 = vmatprep.subr.mxu0 0.0
    %2373 = vmatpush2.msra.mxu0 0.0
    %2374 = vmatprep.subr.mxu0 0.0
    %2375 = vmatpush2.msra.mxu0 0.0
    %2376 = vmatprep.subr.mxu0 0.0
    %2377 = vmatpush2.msra.mxu0 0.0
    %2378 = vmatprep.subr.mxu0 0.0
    %2379 = vmatpush2.msra.mxu0 0.0
    %2380 = vmatprep.mubr.f32.mxu0 0.0
    %2381 = vmatmul.mubr.f32.gmra.mxu0 %v2292
    %v2382 = vpop.f32.mrf.mxu0
    %v2383 = vadd.f32 %v2314, %v2382
    %v2384 = vpop.f32.mrf.mxu0
    %2385 = vdwg.mxu0
    %v2386 = vmax.f32 %v2383, 0.0
    %v2387 = vld [vmem:[#allocation14] sm:$0xff]
    %v2388 = vld [vmem:[#allocation14 + $0x8] sm:$0xff]
    %v2389 = vld [vmem:[#allocation14 + $0x10] sm:$0xff]
    %v2390 = vld [vmem:[#allocation14 + $0x18] sm:$0xff]
    %v2391 = vld [vmem:[#allocation14 + $0x20] sm:$0xff]
    %v2392 = vld [vmem:[#allocation14 + $0x28] sm:$0xff]
    %v2393 = vld [vmem:[#allocation14 + $0x30] sm:$0xff]
    %v2394 = vld [vmem:[#allocation14 + $0x38] sm:$0xff]
    %v2395 = vld [vmem:[#allocation3] sm:$0x1]
    %v2397 = vlaneseq
    %v2398 = vshrl.u32 %v2397, 7
    %v2399 = vsub.s32 0, %v2398
    %v2400 = vrot.slane %v2395, %v2399
    %v2403 = vsel %vm311, %v2386, 0
    %2405 = vmatprep.subr.mxu0 0.0
    %2406 = vmatpush1.msra.mxu0 0.0
    %2407 = vmatprep.subr.mxu0 0.0
    %2408 = vmatpush1.msra.mxu0 0.0
    %2409 = vmatprep.subr.mxu0 0.0
    %2410 = vmatpush1.msra.mxu0 0.0
    %2411 = vmatprep.subr.mxu0 0.0
    %2412 = vmatpush1.msra.mxu0 0.0
    %2413 = vmatprep.subr.mxu0 0.0
    %2414 = vmatpush1.msra.mxu0 0.0
    %2415 = vmatprep.subr.mxu0 0.0
    %2416 = vmatpush1.msra.mxu0 0.0
    %2417 = vmatprep.subr.mxu0 0.0
    %2418 = vmatpush1.msra.mxu0 0.0
    %2419 = vmatprep.subr.mxu0 0.0
    %2420 = vmatpush1.msra.mxu0 0.0
    %2421 = vmatprep.subr.mxu0 0.0
    %2422 = vmatpush1.msra.mxu0 %v2394
    %2423 = vmatprep.subr.mxu0 0.0
    %2424 = vmatpush1.msra.mxu0 %v2393
    %2425 = vmatprep.subr.mxu0 0.0
    %2426 = vmatpush1.msra.mxu0 %v2392
    %2427 = vmatprep.subr.mxu0 0.0
    %2428 = vmatpush1.msra.mxu0 %v2391
    %2429 = vmatprep.subr.mxu0 0.0
    %2430 = vmatpush1.msra.mxu0 %v2390
    %2431 = vmatprep.subr.mxu0 0.0
    %2432 = vmatpush1.msra.mxu0 %v2389
    %2433 = vmatprep.subr.mxu0 0.0
    %2434 = vmatpush1.msra.mxu0 %v2388
    %2435 = vmatprep.subr.mxu0 0.0
    %2436 = vmatpush1.msra.mxu0 %v2387
    %2437 = vmatprep.subr.mxu0 0.0
    %2438 = vmatpush2.msra.mxu0 0.0
    %2439 = vmatprep.subr.mxu0 0.0
    %2440 = vmatpush2.msra.mxu0 0.0
    %2441 = vmatprep.subr.mxu0 0.0
    %2442 = vmatpush2.msra.mxu0 0.0
    %2443 = vmatprep.subr.mxu0 0.0
    %2444 = vmatpush2.msra.mxu0 0.0
    %2445 = vmatprep.subr.mxu0 0.0
    %2446 = vmatpush2.msra.mxu0 0.0
    %2447 = vmatprep.subr.mxu0 0.0
    %2448 = vmatpush2.msra.mxu0 0.0
    %2449 = vmatprep.subr.mxu0 0.0
    %2450 = vmatpush2.msra.mxu0 0.0
    %2451 = vmatprep.subr.mxu0 0.0
    %2452 = vmatpush2.msra.mxu0 0.0
    %2453 = vmatprep.subr.mxu0 0.0
    %2454 = vmatpush2.msra.mxu0 0.0
    %2455 = vmatprep.subr.mxu0 0.0
    %2456 = vmatpush2.msra.mxu0 0.0
    %2457 = vmatprep.subr.mxu0 0.0
    %2458 = vmatpush2.msra.mxu0 0.0
    %2459 = vmatprep.subr.mxu0 0.0
    %2460 = vmatpush2.msra.mxu0 0.0
    %2461 = vmatprep.subr.mxu0 0.0
    %2462 = vmatpush2.msra.mxu0 0.0
    %2463 = vmatprep.subr.mxu0 0.0
    %2464 = vmatpush2.msra.mxu0 0.0
    %2465 = vmatprep.subr.mxu0 0.0
    %2466 = vmatpush2.msra.mxu0 0.0
    %2467 = vmatprep.subr.mxu0 0.0
    %2468 = vmatpush2.msra.mxu0 0.0
    %2469 = vmatprep.mubr.f32.mxu0 0.0
    %2470 = vmatmul.mubr.f32.gmra.mxu0 %v2403
    %v2471 = vpop.f32.mrf.mxu0
    %v2472 = vadd.f32 %v2400, %v2471
    %v2473 = vpop.f32.mrf.mxu0
    %2474 = vdwg.mxu0
    %v2475 = vsub.f32 0.0, %v2472
    %v2476 = vmul.f32 %v2475, 1.442695
    %v2477 = vpow.pop %v2476
    %v2478 = vadd.f32 %v2477, 1.0
    %v2479 = vrcp.pop %v2478
    %v2480 = vmul.f32 1.0, %v2479
    %2481 = vst.msk [vmem:[%s17] sm:$0xf] %vm1340, %v2480
    // Predicated region
    $region98: #{_lambda_.1} parent=1 // pred_check
      _
    $region99: #{_lambda_.1} parent=1 // pred_check_branch
      %2483 = sbr.rel (0) target = $region101
    $region100: #{_lambda_.1} parent=1 // pred_region
      _
    $region101: #{_lambda_.1} parent=1 // pred_fallthru
      _
    // Predicated region
    $region102: #{_lambda_.1} parent=1 // pred_check
      _
    $region103: #{_lambda_.1} parent=1 // pred_check_branch
      %2485 = sbr.rel (0) target = $region105
    $region104: #{_lambda_.1} parent=1 // pred_region
      _
    $region105: #{_lambda_.1} parent=1 // pred_fallthru
      _
    // Predicated region
    $region106: #{_lambda_.1} parent=1 // pred_check
      _
    $region107: #{_lambda_.1} parent=1 // pred_check_branch
      %2487 = sbr.rel (0) target = $region109
    $region108: #{_lambda_.1} parent=1 // pred_region
      _
    $region109: #{_lambda_.1} parent=1 // pred_fallthru
      _
    // Predicated region
    $region110: #{_lambda_.1} parent=1 // pred_check
      _
    $region111: #{_lambda_.1} parent=1 // pred_check_branch
      %2489 = sbr.rel (0) target = $region113
    $region112: #{_lambda_.1} parent=1 // pred_region
      _
    $region113: #{_lambda_.1} parent=1 // pred_fallthru
      _
    %2490 = vsyncpa [#allocation5], 1
    %2491 = vsyncpa [#allocation7], 1
    %2492 = vsyncpa [#allocation10], 1
    %2493 = vsyncpa [#allocation13], 1

</llo_original>
